<compile_context>
chip_gen: v5e
topology: v5e:2x2
jax: 0.10.0
libtpu: 0.0.40
codegen_flags: <defaults>
</compile_context>

<pallas_src>
import numpy as np
import jax
import jax.numpy as jnp
from jax.experimental import pallas as pl
from jax.experimental.pallas import tpu as pltpu


# ---------------------------------------------------------------------------
# Pallas kernel: PSA forward for BT windows, everything in the permuted
# (M, 4c) layout.  Static sizes are derived from the ref shapes.
# ---------------------------------------------------------------------------
def psa_kernel(x4_ref, wqkvT_ref, bqkv_ref, mask_ref, rpb_ref, segA_ref,
               bcast_ref, wpT_ref, bp_ref, o_ref):
    BT, M, c4 = x4_ref.shape
    K4 = mask_ref.shape[0]          # = 4 * num_heads * M
    n_rep = K4 // M                 # = 4 * num_heads (sublane replication)

    x4 = x4_ref[...].reshape(BT * M, c4)            # bf16, lane-dense

    # Fused q/k/v projection.  qk scale is folded into Wq/bq; the k/v lane
    # replication is folded into the pre-tiled weights, so kt/vt come out
    # already 4c (=128) lanes wide.  One (BT*M, 3*4c) bf16 matmul.
    qkv = jnp.dot(x4, wqkvT_ref[...],
                  preferred_element_type=jnp.float32) + bqkv_ref[...]
    q4 = qkv[:, :c4].reshape(BT, M, c4).astype(jnp.bfloat16)
    kt = qkv[:, c4:2 * c4].reshape(BT, M, c4).astype(jnp.bfloat16)
    vt = qkv[:, 2 * c4:].reshape(BT, M, c4).astype(jnp.bfloat16)

    mask = mask_ref[...]                            # (K4, 4c) 0/1, bf16
    # Note: bf16 elementwise mask math is ideal on v6e/v7x; on v5e the VPU
    # emulates bf16 but the block is only 4 vregs, so one code path is kept.

    # K expanded to the (4*H*M, 4c) block layout (sublane replicate + mask).
    KR = jnp.concatenate([kt] * n_rep, axis=-2) * mask[None]

    # Scores for all 4 sub-tokens x H heads at once: (BT, M, K4), lane-dense.
    s = jnp.einsum('bpc,bkc->bpk', q4, KR,
                   preferred_element_type=jnp.float32)
    s = s + rpb_ref[...][None]

    # TODO(synk): row-global max shift (exact by shift invariance) instead of
    # per-segment max; if a segment's score spread vs. the row max exceeds
    # ~88 (f32 exp underflow) the epsilon below yields 0 for that segment
    # instead of the exact softmax.  Not reachable with realistic magnitudes.
    s = s - jnp.max(s, axis=-1, keepdims=True)
    p = jnp.exp(s).astype(jnp.bfloat16)             # unnormalized probs, <= 1

    # Per-segment softmax denominators via a skinny (K4, 4H) 0/1 reducer.
    ssum = jnp.dot(p.reshape(BT * M, K4), segA_ref[...],
                   preferred_element_type=jnp.float32)
    inv = pl.reciprocal(ssum + jnp.float32(1e-30), approx=True)  # (BT*M, 4H)

    # V in the same block layout (built after the scores to limit liveness).
    VR = jnp.concatenate([vt] * n_rep, axis=-2) * mask[None]

    # attn @ v (unnormalized), then exact post-AV normalization: the VR mask
    # guarantees each hd-wide output lane group depends on exactly one
    # segment, so scaling o4 by the broadcast per-segment inverse is exact.
    o4 = jnp.einsum('bpk,bkc->bpc', p, VR,
                    preferred_element_type=jnp.float32)
    norm = jnp.dot(inv, bcast_ref[...],
                   preferred_element_type=jnp.float32)           # (BT*M, 4c)
    o4 = o4 * norm.reshape(BT, M, c4)

    # Fused per-sub-token output projection (block-diagonal Wp, 128x128 tile).
    out = jnp.dot(o4.reshape(BT * M, c4).astype(jnp.bfloat16), wpT_ref[...],
                  preferred_element_type=jnp.float32) + bp_ref[...]
    o_ref[...] = out.reshape(BT, M, c4)


# ---------------------------------------------------------------------------
# Static index helpers (replicate the PyTorch buffer construction).
# ---------------------------------------------------------------------------
def aligned_relative_position_index(pwh, pww):
    coords_h = np.arange(pwh)
    coords_w = np.arange(pww)
    mesh = np.meshgrid(coords_h, coords_w, indexing='xy')
    coords = np.stack(mesh)
    coords_flatten = coords.reshape(2, -1)
    rel = coords_flatten[:, :, None] - coords_flatten[:, None, :]
    rel = rel.transpose(1, 2, 0).copy()
    rel[:, :, 0] += pwh - 1
    rel[:, :, 1] += pww - 1
    rel[:, :, 0] *= 2 * pww - 1
    idx = rel.sum(-1)
    M = pwh * pww
    aligned = idx.reshape(pwh, pww, 1, 1, M)
    aligned = np.tile(aligned, (1, 1, 2, 2, 1))
    aligned = aligned.transpose(0, 2, 1, 3, 4).reshape(4 * M, M)
    return aligned.astype(np.int32)


def _block_diag(W, reps=4):
    a, b = W.shape
    out = jnp.zeros((reps * a, reps * b), W.dtype)
    for g in range(reps):
        out = out.at[g * a:(g + 1) * a, g * b:(g + 1) * b].set(W)
    return out


# ---------------------------------------------------------------------------
# One-time packing of all call-invariant constants (cache this for inference).
# ---------------------------------------------------------------------------
def pack_psa_params(Wq, bq, Wkv, bkv, Wp, bp, table, window_size, num_heads):
    c = Wq.shape[0]
    wh, ww = window_size
    assert wh % 2 == 0 and ww % 2 == 0, "window sides must be even"
    assert c % 4 == 0 and c % num_heads == 0, "dim must divide by 4 and heads"
    pwh, pww = wh // 2, ww // 2
    M, n = pwh * pww, wh * ww
    hd = c // num_heads
    scale = hd ** (-0.5)
    c4 = 4 * c
    n_sub = 4 * num_heads
    K4 = n_sub * M

    # q / proj weights, block-diag expanded to the 2x2-grouped channel layout;
    # qk scale is folded into Wq / bq.
    wqT_bd = _block_diag((Wq * scale).T)                       # (4c, 4c)
    wpT_bd = _block_diag(Wp.T)                                 # (4c, 4c)

    # kv: pixel-unshuffle folded into block-diag expansion of Wk / Wv, then
    # tiled (1,4) along lanes so the projection emits the lane-dense kt/vt.
    ckv = c // 4
    Wk, Wv = Wkv[:ckv], Wkv[ckv:2 * ckv]
    bk, bv = bkv[:ckv], bkv[ckv:2 * ckv]
    wkT_tiled = jnp.tile(_block_diag(Wk.T), (1, 4))            # (4c, 4c)
    wvT_tiled = jnp.tile(_block_diag(Wv.T), (1, 4))            # (4c, 4c)

    wqkvT = jnp.concatenate([wqT_bd, wkT_tiled, wvT_tiled],
                            axis=1).astype(jnp.bfloat16)       # (4c, 12c)
    bqkv = jnp.concatenate([jnp.tile(bq * scale, 4),
                            jnp.tile(bk, 4 * 4),
                            jnp.tile(bv, 4 * 4)]).reshape(1, 3 * c4)
    bqkv = bqkv.astype(jnp.float32)
    bp4 = jnp.tile(bp, 4).reshape(1, c4).astype(jnp.float32)

    # relative position bias re-packed to the (M, 4*H*M) score layout.
    aligned = aligned_relative_position_index(pwh, pww)        # (n, M)
    rpb = table[jnp.asarray(aligned.reshape(-1))].reshape(n, M, num_heads)
    rpb = jnp.transpose(rpb, (2, 0, 1)).astype(jnp.float32)    # (H, n, M)
    rpb = rpb.reshape(num_heads, pwh, 2, pww, 2, M)
    rpb = jnp.transpose(rpb, (0, 1, 3, 2, 4, 5)).reshape(num_heads, M, 4, M)
    rpb4 = jnp.transpose(rpb, (1, 2, 0, 3)).reshape(M, K4)     # (M, 4*H*M)

    # static masks: head/sub-token block mask, segment-sum reducer and the
    # segment -> output-lane broadcast matrix.
    rows = np.arange(K4)
    g_r = rows // (num_heads * M)
    h_r = (rows // M) % num_heads
    cols = np.arange(c4)
    g_c = cols // c
    h_c = (cols % c) // hd
    head_mask = ((g_r[:, None] == g_c[None, :]) &
                 (h_r[:, None] == h_c[None, :])).astype(np.float32)
    segA = (rows[:, None] // M == np.arange(n_sub)[None, :]).astype(np.float32)
    bcastB = (np.arange(n_sub)[:, None] == (cols // hd)[None, :]).astype(np.float32)

    return dict(wqkvT=wqkvT, bqkv=bqkv, wpT=wpT_bd.astype(jnp.bfloat16),
                bp4=bp4, rpb4=rpb4,
                head_mask=jnp.asarray(head_mask, jnp.bfloat16),
                segA=jnp.asarray(segA, jnp.bfloat16),
                bcastB=jnp.asarray(bcastB, jnp.float32),
                meta=dict(c=c, n=n, M=M, H=num_heads, hd=hd,
                          pwh=pwh, pww=pww))


# ---------------------------------------------------------------------------
# Forward wrapper: pixel-unshuffle / inverse are pure reshape-transposes.
# ---------------------------------------------------------------------------
def psa_forward(x, packed, *, bt_max=32):
    # bt_max=32 keeps the bf16 working set well inside v7x's 64 MiB VMEM;
    # on v5e / v6e (128 MiB) bt_max=64 is a valid bump.
    meta = packed['meta']
    c, n, M, H = meta['c'], meta['n'], meta['M'], meta['H']
    pwh, pww = meta['pwh'], meta['pww']
    c4 = 4 * c
    n_sub = 4 * H
    K4 = n_sub * M
    b_, n_in, c_in = x.shape
    assert n_in == n and c_in == c

    # (b, n, c) -> (b, M, 4c) in bf16 (halves HBM traffic of the relayout and
    # feeds the MXU its native dtype).
    # TODO(synk): the unshuffle / inverse could be fused into the kernel or
    # its consumer to save one full HBM read+write of the activations.
    x4 = x.astype(jnp.bfloat16).reshape(b_, pwh, 2, pww, 2, c)
    x4 = jnp.transpose(x4, (0, 1, 3, 2, 4, 5)).reshape(b_, M, c4)

    # BT windows per grid step: amortize per-step overhead, keep >=2 steps
    # (v7x megacore), cap block so the working set stays well inside VMEM.
    BT = max(1, min(bt_max, -(-b_ // 2)))
    nsteps = -(-b_ // BT)
    padded_b = nsteps * BT
    if padded_b != b_:
        x4 = jnp.pad(x4, ((0, padded_b - b_), (0, 0), (0, 0)))

    flops_per_win = (2 * M * c4 * (3 * c4)      # fused qkv projection
                     + 2 * M * c4 * K4          # scores
                     + 2 * M * K4 * n_sub       # segment sums
                     + 2 * M * K4 * c4          # attn @ v
                     + 2 * M * n_sub * c4       # denominator broadcast
                     + 2 * M * c4 * c4)         # output projection
    cost = pl.CostEstimate(
        flops=int(padded_b * flops_per_win),
        transcendentals=int(padded_b * (M * K4 + M * n_sub)),
        bytes_accessed=int(padded_b * M * c4 * (2 + 4)
                           + (c4 * 3 * c4 + K4 * c4 + c4 * c4 + K4 * n_sub) * 2
                           + (3 * c4 + M * K4 + n_sub * c4 + c4) * 4))

    out4 = pl.pallas_call(
        psa_kernel,
        out_shape=jax.ShapeDtypeStruct((padded_b, M, c4), jnp.float32),
        grid_spec=pltpu.PrefetchScalarGridSpec(
            num_scalar_prefetch=0,
            grid=(nsteps,),
            in_specs=[
                pl.BlockSpec((BT, M, c4), lambda i: (i, 0, 0)),    # x4 (bf16)
                pl.BlockSpec((c4, 3 * c4), lambda i: (0, 0)),      # fused Wqkv^T
                pl.BlockSpec((1, 3 * c4), lambda i: (0, 0)),       # fused bias
                pl.BlockSpec((K4, c4), lambda i: (0, 0)),          # block mask
                pl.BlockSpec((M, K4), lambda i: (0, 0)),           # rel-pos bias
                pl.BlockSpec((K4, n_sub), lambda i: (0, 0)),       # segment reducer
                pl.BlockSpec((n_sub, c4), lambda i: (0, 0)),       # seg -> lane bcast
                pl.BlockSpec((c4, c4), lambda i: (0, 0)),          # Wp^T block-diag
                pl.BlockSpec((1, c4), lambda i: (0, 0)),           # bp (tiled)
            ],
            out_specs=pl.BlockSpec((BT, M, c4), lambda i: (i, 0, 0)),
        ),
        compiler_params=pltpu.CompilerParams(
            dimension_semantics=("parallel",),
            vmem_limit_bytes=32 * 1024 * 1024),
        cost_estimate=cost,
    )(x4, packed['wqkvT'], packed['bqkv'], packed['head_mask'], packed['rpb4'],
      packed['segA'], packed['bcastB'], packed['wpT'], packed['bp4'])

    # inverse pixel-unshuffle back to (b, n, c); drop batch padding.
    out = out4[:b_].reshape(b_, pwh, pww, 2, 2, c)
    out = jnp.transpose(out, (0, 1, 3, 2, 4, 5)).reshape(b_, n, c)
    return out


# ---------------------------------------------------------------------------
# Pure-JAX reference (direct transliteration of the PyTorch forward).
# ---------------------------------------------------------------------------
def psa_reference(x, Wq, bq, Wkv, bkv, Wp, bp, table, window_size, num_heads):
    b_, n, c = x.shape
    wh, ww = window_size
    pwh, pww = wh // 2, ww // 2
    M = pwh * pww
    H = num_heads
    hd = c // H
    scale = hd ** (-0.5)

    kv = x @ Wkv.T + bkv
    kv = kv.reshape(b_, pwh, 2, pww, 2, 2, c // 4)
    kv = jnp.transpose(kv, (0, 1, 3, 5, 2, 4, 6)).reshape(b_, n // 4, 2, H, hd)
    kv = jnp.transpose(kv, (2, 0, 3, 1, 4))
    k, v = kv[0], kv[1]
    q = (x @ Wq.T + bq).reshape(b_, n, 1, H, hd)
    q = jnp.transpose(q, (2, 0, 3, 1, 4))[0] * scale
    attn = jnp.einsum('bhnd,bhmd->bhnm', q, k)
    aligned = aligned_relative_position_index(pwh, pww)
    rpb = table[jnp.asarray(aligned).reshape(-1)].reshape(n, M, H)
    rpb = jnp.transpose(rpb, (2, 0, 1))
    attn = attn + rpb[None]
    attn = jax.nn.softmax(attn, axis=-1)
    out = jnp.einsum('bhnm,bhmd->bhnd', attn, v)
    out = jnp.transpose(out, (0, 2, 1, 3)).reshape(b_, n, c)
    return out @ Wp.T + bp


# ---------------------------------------------------------------------------
if __name__ == "__main__":
    dim, window_size, num_heads = 32, (8, 8), 4
    b_ = 4                                   # num_windows * batch
    wh, ww = window_size
    n = wh * ww                              # 64
    pwh, pww = wh // 2, ww // 2

    key = jax.random.PRNGKey(0)
    ks = jax.random.split(key, 8)
    x = jax.random.normal(ks[0], (b_, n, dim), jnp.float32)
    Wq = jax.random.normal(ks[1], (dim, dim), jnp.float32) * 0.05
    bq = jax.random.normal(ks[2], (dim,), jnp.float32) * 0.05
    Wkv = jax.random.normal(ks[3], (dim // 2, dim), jnp.float32) * 0.05
    bkv = jax.random.normal(ks[4], (dim // 2,), jnp.float32) * 0.05
    Wp = jax.random.normal(ks[5], (dim, dim), jnp.float32) * 0.05
    bp = jax.random.normal(ks[6], (dim,), jnp.float32) * 0.05
    table = jax.random.normal(
        ks[7], ((2 * pwh - 1) * (2 * pww - 1), num_heads), jnp.float32) * 0.02

    packed = pack_psa_params(Wq, bq, Wkv, bkv, Wp, bp, table,
                             window_size, num_heads)
    out = psa_forward(x, packed)
    out = jax.block_until_ready(out)

    ref = psa_reference(x, Wq, bq, Wkv, bkv, Wp, bp, table,
                        window_size, num_heads)
    np.testing.assert_allclose(np.asarray(out), np.asarray(ref),
                               rtol=5e-3, atol=5e-3)
    print("KERNEL_OK")
</pallas_src>

<mosaic_0001>
module attributes {stable_mosaic.version = 11 : i64} {
  func.func @psa_kernel(%arg0: i32, %arg1: memref<2x16x128xbf16, #tpu.memory_space<vmem>>, %arg2: memref<128x384xbf16, #tpu.memory_space<vmem>>, %arg3: memref<1x384xf32, #tpu.memory_space<vmem>>, %arg4: memref<256x128xbf16, #tpu.memory_space<vmem>>, %arg5: memref<16x256xf32, #tpu.memory_space<vmem>>, %arg6: memref<256x16xbf16, #tpu.memory_space<vmem>>, %arg7: memref<16x128xf32, #tpu.memory_space<vmem>>, %arg8: memref<128x128xbf16, #tpu.memory_space<vmem>>, %arg9: memref<1x128xf32, #tpu.memory_space<vmem>>, %arg10: memref<2x16x128xf32, #tpu.memory_space<vmem>>) attributes {dimension_semantics = [#tpu.dimension_semantics<parallel>], iteration_bounds = array<i64: 2>, scalar_prefetch = 0 : i64, scratch_operands = 0 : i64, tpu.core_type = #tpu.core_type<tc>, window_params = [{transform_indices = @transform_0, window_bounds = array<i64: 2, 16, 128>}, {pipeline_mode = #tpu.pipeline_mode<synchronous>, transform_indices = @transform_1, window_bounds = array<i64: 128, 384>}, {pipeline_mode = #tpu.pipeline_mode<synchronous>, transform_indices = @transform_2, window_bounds = array<i64: 1, 384>}, {pipeline_mode = #tpu.pipeline_mode<synchronous>, transform_indices = @transform_3, window_bounds = array<i64: 256, 128>}, {pipeline_mode = #tpu.pipeline_mode<synchronous>, transform_indices = @transform_4, window_bounds = array<i64: 16, 256>}, {pipeline_mode = #tpu.pipeline_mode<synchronous>, transform_indices = @transform_5, window_bounds = array<i64: 256, 16>}, {pipeline_mode = #tpu.pipeline_mode<synchronous>, transform_indices = @transform_6, window_bounds = array<i64: 16, 128>}, {pipeline_mode = #tpu.pipeline_mode<synchronous>, transform_indices = @transform_7, window_bounds = array<i64: 128, 128>}, {pipeline_mode = #tpu.pipeline_mode<synchronous>, transform_indices = @transform_8, window_bounds = array<i64: 1, 128>}, {transform_indices = @transform_9, window_bounds = array<i64: 2, 16, 128>}]} {
    %c0 = arith.constant 0 : index
    %c0_0 = arith.constant 0 : index
    %c0_1 = arith.constant 0 : index
    %0 = vector.load %arg1[%c0, %c0_0, %c0_1] : memref<2x16x128xbf16, #tpu.memory_space<vmem>>, vector<2x16x128xbf16>
    %1 = vector.shape_cast %0 : vector<2x16x128xbf16> to vector<32x128xbf16>
    %c0_2 = arith.constant 0 : index
    %c0_3 = arith.constant 0 : index
    %2 = vector.load %arg2[%c0_2, %c0_3] : memref<128x384xbf16, #tpu.memory_space<vmem>>, vector<128x384xbf16>
    %cst = arith.constant dense<0.000000e+00> : vector<32x384xf32>
    %3 = tpu.matmul %1, %2, %cst {dimension_numbers = #tpu.dot_dimension_numbers<[1], [0], [0], [1], [0, 0, 1, 1], [], []>} : vector<32x128xbf16>, vector<128x384xbf16>, vector<32x384xf32> -> vector<32x384xf32>
    %c0_4 = arith.constant 0 : index
    %c0_5 = arith.constant 0 : index
    %4 = vector.load %arg3[%c0_4, %c0_5] : memref<1x384xf32, #tpu.memory_space<vmem>>, vector<1x384xf32>
    %5 = vector.broadcast %4 : vector<1x384xf32> to vector<32x384xf32>
    %6 = arith.addf %3, %5 : vector<32x384xf32>
    %7 = vector.extract_strided_slice %6 {offsets = [0, 0], sizes = [32, 128], strides = [1, 1]} : vector<32x384xf32> to vector<32x128xf32>
    %8 = vector.shape_cast %7 : vector<32x128xf32> to vector<2x16x128xf32>
    %9 = arith.truncf %8 : vector<2x16x128xf32> to vector<2x16x128xbf16>
    %10 = vector.extract_strided_slice %6 {offsets = [0, 128], sizes = [32, 128], strides = [1, 1]} : vector<32x384xf32> to vector<32x128xf32>
    %11 = vector.shape_cast %10 : vector<32x128xf32> to vector<2x16x128xf32>
    %12 = arith.truncf %11 : vector<2x16x128xf32> to vector<2x16x128xbf16>
    %13 = vector.extract_strided_slice %6 {offsets = [0, 256], sizes = [32, 128], strides = [1, 1]} : vector<32x384xf32> to vector<32x128xf32>
    %14 = vector.shape_cast %13 : vector<32x128xf32> to vector<2x16x128xf32>
    %15 = arith.truncf %14 : vector<2x16x128xf32> to vector<2x16x128xbf16>
    %c0_6 = arith.constant 0 : index
    %c0_7 = arith.constant 0 : index
    %16 = vector.load %arg4[%c0_6, %c0_7] : memref<256x128xbf16, #tpu.memory_space<vmem>>, vector<256x128xbf16>
    %17 = tpu.concatenate %12, %12, %12, %12, %12, %12, %12, %12, %12, %12, %12, %12, %12, %12, %12, %12 in 1 : vector<2x16x128xbf16>, vector<2x16x128xbf16>, vector<2x16x128xbf16>, vector<2x16x128xbf16>, vector<2x16x128xbf16>, vector<2x16x128xbf16>, vector<2x16x128xbf16>, vector<2x16x128xbf16>, vector<2x16x128xbf16>, vector<2x16x128xbf16>, vector<2x16x128xbf16>, vector<2x16x128xbf16>, vector<2x16x128xbf16>, vector<2x16x128xbf16>, vector<2x16x128xbf16>, vector<2x16x128xbf16> -> vector<2x256x128xbf16>
    %18 = vector.shape_cast %16 : vector<256x128xbf16> to vector<1x256x128xbf16>
    %19 = vector.broadcast %18 : vector<1x256x128xbf16> to vector<2x256x128xbf16>
    %20 = arith.mulf %17, %19 : vector<2x256x128xbf16>
    "tpu.trace_start"() <{level = 10 : i32, message = "bpc,bkc->bpk"}> : () -> ()
    %cst_8 = arith.constant dense<0.000000e+00> : vector<2x16x256xf32>
    %21 = tpu.matmul %9, %20, %cst_8 {dimension_numbers = #tpu.dot_dimension_numbers<[2], [2], [1], [1], [0, 0, 0, 1, 1, 1], [0], [0]>} : vector<2x16x128xbf16>, vector<2x256x128xbf16>, vector<2x16x256xf32> -> vector<2x16x256xf32>
    "tpu.trace_stop"() : () -> ()
    %c0_9 = arith.constant 0 : index
    %c0_10 = arith.constant 0 : index
    %22 = vector.load %arg5[%c0_9, %c0_10] : memref<16x256xf32, #tpu.memory_space<vmem>>, vector<16x256xf32>
    %23 = vector.shape_cast %22 : vector<16x256xf32> to vector<1x16x256xf32>
    %24 = vector.broadcast %23 : vector<1x16x256xf32> to vector<2x16x256xf32>
    %25 = arith.addf %21, %24 : vector<2x16x256xf32>
    %cst_11 = arith.constant dense<0xFF800000> : vector<2x16xf32>
    %26 = vector.multi_reduction <maximumf>, %25, %cst_11 [2] : vector<2x16x256xf32> to vector<2x16xf32>
    %27 = vector.shape_cast %26 : vector<2x16xf32> to vector<2x16x1xf32>
    %28 = vector.broadcast %27 : vector<2x16x1xf32> to vector<2x16x256xf32>
    %29 = arith.subf %25, %28 : vector<2x16x256xf32>
    %30 = math.exp %29 : vector<2x16x256xf32>
    %31 = arith.truncf %30 : vector<2x16x256xf32> to vector<2x16x256xbf16>
    %32 = vector.shape_cast %31 : vector<2x16x256xbf16> to vector<32x256xbf16>
    %c0_12 = arith.constant 0 : index
    %c0_13 = arith.constant 0 : index
    %33 = vector.load %arg6[%c0_12, %c0_13] : memref<256x16xbf16, #tpu.memory_space<vmem>>, vector<256x16xbf16>
    %cst_14 = arith.constant dense<0.000000e+00> : vector<32x16xf32>
    %34 = tpu.matmul %32, %33, %cst_14 {dimension_numbers = #tpu.dot_dimension_numbers<[1], [0], [0], [1], [0, 0, 1, 1], [], []>} : vector<32x256xbf16>, vector<256x16xbf16>, vector<32x16xf32> -> vector<32x16xf32>
    %cst_15 = arith.constant 1.000000e-30 : f32
    %35 = vector.broadcast %cst_15 : f32 to vector<32x16xf32>
    %36 = arith.addf %34, %35 : vector<32x16xf32>
    %37 = tpu.reciprocal %36 {approx = true} : vector<32x16xf32> -> vector<32x16xf32>
    %38 = tpu.concatenate %15, %15, %15, %15, %15, %15, %15, %15, %15, %15, %15, %15, %15, %15, %15, %15 in 1 : vector<2x16x128xbf16>, vector<2x16x128xbf16>, vector<2x16x128xbf16>, vector<2x16x128xbf16>, vector<2x16x128xbf16>, vector<2x16x128xbf16>, vector<2x16x128xbf16>, vector<2x16x128xbf16>, vector<2x16x128xbf16>, vector<2x16x128xbf16>, vector<2x16x128xbf16>, vector<2x16x128xbf16>, vector<2x16x128xbf16>, vector<2x16x128xbf16>, vector<2x16x128xbf16>, vector<2x16x128xbf16> -> vector<2x256x128xbf16>
    %39 = vector.shape_cast %16 : vector<256x128xbf16> to vector<1x256x128xbf16>
    %40 = vector.broadcast %39 : vector<1x256x128xbf16> to vector<2x256x128xbf16>
    %41 = arith.mulf %38, %40 : vector<2x256x128xbf16>
    "tpu.trace_start"() <{level = 10 : i32, message = "bpk,bkc->bpc"}> : () -> ()
    %cst_16 = arith.constant dense<0.000000e+00> : vector<2x16x128xf32>
    %42 = tpu.matmul %31, %41, %cst_16 {dimension_numbers = #tpu.dot_dimension_numbers<[2], [1], [1], [2], [0, 0, 0, 1, 1, 2], [0], [0]>} : vector<2x16x256xbf16>, vector<2x256x128xbf16>, vector<2x16x128xf32> -> vector<2x16x128xf32>
    "tpu.trace_stop"() : () -> ()
    %c0_17 = arith.constant 0 : index
    %c0_18 = arith.constant 0 : index
    %43 = vector.load %arg7[%c0_17, %c0_18] : memref<16x128xf32, #tpu.memory_space<vmem>>, vector<16x128xf32>
    %cst_19 = arith.constant dense<0.000000e+00> : vector<32x128xf32>
    %44 = tpu.matmul %37, %43, %cst_19 {dimension_numbers = #tpu.dot_dimension_numbers<[1], [0], [0], [1], [0, 0, 1, 1], [], []>} : vector<32x16xf32>, vector<16x128xf32>, vector<32x128xf32> -> vector<32x128xf32>
    %45 = vector.shape_cast %44 : vector<32x128xf32> to vector<2x16x128xf32>
    %46 = arith.mulf %42, %45 : vector<2x16x128xf32>
    %47 = vector.shape_cast %46 : vector<2x16x128xf32> to vector<32x128xf32>
    %48 = arith.truncf %47 : vector<32x128xf32> to vector<32x128xbf16>
    %c0_20 = arith.constant 0 : index
    %c0_21 = arith.constant 0 : index
    %49 = vector.load %arg8[%c0_20, %c0_21] : memref<128x128xbf16, #tpu.memory_space<vmem>>, vector<128x128xbf16>
    %cst_22 = arith.constant dense<0.000000e+00> : vector<32x128xf32>
    %50 = tpu.matmul %48, %49, %cst_22 {dimension_numbers = #tpu.dot_dimension_numbers<[1], [0], [0], [1], [0, 0, 1, 1], [], []>} : vector<32x128xbf16>, vector<128x128xbf16>, vector<32x128xf32> -> vector<32x128xf32>
    %c0_23 = arith.constant 0 : index
    %c0_24 = arith.constant 0 : index
    %51 = vector.load %arg9[%c0_23, %c0_24] : memref<1x128xf32, #tpu.memory_space<vmem>>, vector<1x128xf32>
    %52 = vector.broadcast %51 : vector<1x128xf32> to vector<32x128xf32>
    %53 = arith.addf %50, %52 : vector<32x128xf32>
    %54 = vector.shape_cast %53 : vector<32x128xf32> to vector<2x16x128xf32>
    %c0_25 = arith.constant 0 : index
    %c0_26 = arith.constant 0 : index
    %c0_27 = arith.constant 0 : index
    %55 = vector.load %arg10[%c0_25, %c0_26, %c0_27] : memref<2x16x128xf32, #tpu.memory_space<vmem>>, vector<2x16x128xf32>
    tpu.vector_store %arg10[%c0_25, %c0_26, %c0_27], %54 {strides = array<i32>} : memref<2x16x128xf32, #tpu.memory_space<vmem>>, vector<2x16x128xf32>,
    return
  }
  func.func @transform_0(%arg0: i32) -> (i32, i32, i32) {
    %c0_i32 = arith.constant 0 : i32
    %c0_i32_0 = arith.constant 0 : i32
    %c0_i32_1 = arith.constant 0 : i32
    return %arg0, %c0_i32, %c0_i32_0 : i32, i32, i32
  }
  func.func @transform_1(%arg0: i32) -> (i32, i32) {
    %c0_i32 = arith.constant 0 : i32
    %c0_i32_0 = arith.constant 0 : i32
    %c0_i32_1 = arith.constant 0 : i32
    return %c0_i32, %c0_i32_0 : i32, i32
  }
  func.func @transform_2(%arg0: i32) -> (i32, i32) {
    %c0_i32 = arith.constant 0 : i32
    %c0_i32_0 = arith.constant 0 : i32
    %c0_i32_1 = arith.constant 0 : i32
    return %c0_i32, %c0_i32_0 : i32, i32
  }
  func.func @transform_3(%arg0: i32) -> (i32, i32) {
    %c0_i32 = arith.constant 0 : i32
    %c0_i32_0 = arith.constant 0 : i32
    %c0_i32_1 = arith.constant 0 : i32
    return %c0_i32, %c0_i32_0 : i32, i32
  }
  func.func @transform_4(%arg0: i32) -> (i32, i32) {
    %c0_i32 = arith.constant 0 : i32
    %c0_i32_0 = arith.constant 0 : i32
    %c0_i32_1 = arith.constant 0 : i32
    return %c0_i32, %c0_i32_0 : i32, i32
  }
  func.func @transform_5(%arg0: i32) -> (i32, i32) {
    %c0_i32 = arith.constant 0 : i32
    %c0_i32_0 = arith.constant 0 : i32
    %c0_i32_1 = arith.constant 0 : i32
    return %c0_i32, %c0_i32_0 : i32, i32
  }
  func.func @transform_6(%arg0: i32) -> (i32, i32) {
    %c0_i32 = arith.constant 0 : i32
    %c0_i32_0 = arith.constant 0 : i32
    %c0_i32_1 = arith.constant 0 : i32
    return %c0_i32, %c0_i32_0 : i32, i32
  }
  func.func @transform_7(%arg0: i32) -> (i32, i32) {
    %c0_i32 = arith.constant 0 : i32
    %c0_i32_0 = arith.constant 0 : i32
    %c0_i32_1 = arith.constant 0 : i32
    return %c0_i32, %c0_i32_0 : i32, i32
  }
  func.func @transform_8(%arg0: i32) -> (i32, i32) {
    %c0_i32 = arith.constant 0 : i32
    %c0_i32_0 = arith.constant 0 : i32
    %c0_i32_1 = arith.constant 0 : i32
    return %c0_i32, %c0_i32_0 : i32, i32
  }
  func.func @transform_9(%arg0: i32) -> (i32, i32, i32) {
    %c0_i32 = arith.constant 0 : i32
    %c0_i32_0 = arith.constant 0 : i32
    %c0_i32_1 = arith.constant 0 : i32
    return %arg0, %c0_i32, %c0_i32_0 : i32, i32, i32
  }
}

</mosaic_0001>

<llo_original>
// kernel: tpu_custom_call.1
$region0: #{tpu_custom_call.1}
  #allocation0 [shape = 'u32[]', space=smem, size = 0x4, offset = 0x4, fixed_abs, tag = 'smem constant byte address 0x4 - core index']
  #allocation1 [shape = 'u32[72,128]{1,0:T(1,128)}', space=vmem, size = 0x9000, scoped, tag = 'internal scratch']
  %s0 = inlined_call_operand.hbm [shape: bf16[4,16,128], index: 0, kind: input, shape index: {}]
  %s1 = inlined_call_operand.hbm [shape: bf16[128,384], index: 1, kind: input, shape index: {}]
  %s2 = inlined_call_operand.hbm [shape: f32[1,384], index: 2, kind: input, shape index: {}]
  %s3 = inlined_call_operand.vmem [shape: bf16[256,128], index: 3, kind: input, shape index: {}]
  %s4 = inlined_call_operand.hbm [shape: f32[16,256], index: 4, kind: input, shape index: {}]
  %s5 = inlined_call_operand.vmem [shape: bf16[256,16], index: 5, kind: input, shape index: {}]
  %s6 = inlined_call_operand.vmem [shape: f32[16,128], index: 6, kind: input, shape index: {}]
  %s7 = inlined_call_operand.hbm [shape: bf16[128,128], index: 7, kind: input, shape index: {}]
  %s8 = inlined_call_operand.vmem [shape: f32[1,128], index: 8, kind: input, shape index: {}]
  %s9 = inlined_call_operand.hbm [shape: f32[4,16,128], index: 9, kind: output, shape index: {}]
  %s10 = sld [smem:[#allocation0]]
  $region89: #{tpu_custom_call.1} parent=0
    _
  %s12 = ssub.s32 1, %s10
  %s13 = scalar_select 0, %s12, %s10
  $region1: #{tpu_custom_call.1} parent=0
    #allocation2 [shape = 'u8[16384]{0}', space=vmem, size = 0x4000, scoped, tag = 'input window, operand 0']
    #allocation3 [shape = 's32[2]{0}', space=sflag, size = 0x8, scoped, tag = 'scoped memory for tpu_custom_call.1']
    #allocation4 [shape = 's32[2]{0}', space=sflag, size = 0x8, scoped, tag = 'scoped memory for tpu_custom_call.1']
    #allocation5 [shape = 'u8[98304]{0}', space=vmem, size = 0x18000, scoped, tag = 'input window, operand 1, single buffered']
    #allocation6 [shape = 's32[1]{0}', space=sflag, size = 0x4, scoped, tag = 'scoped memory for tpu_custom_call.1']
    #allocation7 [shape = 'u8[1536]{0}', space=vmem, size = 0x800, scoped, tag = 'input window, operand 2, single buffered']
    #allocation8 [shape = 'u8[16384]{0}', space=vmem, size = 0x4000, scoped, tag = 'input window, operand 4, single buffered']
    #allocation9 [shape = 's32[1]{0}', space=sflag, size = 0x4, scoped, tag = 'scoped memory for tpu_custom_call.1']
    #allocation10 [shape = 'u8[32768]{0}', space=vmem, size = 0x8000, scoped, tag = 'input window, operand 7, single buffered']
    #allocation11 [shape = 'u8[32768]{0}', space=vmem, size = 0x8000, scoped, tag = 'output window, operand 0']
    %14 = vsyncpa [#allocation3], 0
    %s15 = scalar_lea.sflag [#allocation3], 1
    %16 = vsyncpa %s15, 0
    %17 = vsyncpa [#allocation6], 0
    %18 = vsyncpa [#allocation9], 0
    %19 = vsyncpa [#allocation4], 0
    %s20 = scalar_lea.sflag [#allocation4], 1
    %21 = vsyncpa %s20, 0
    loop: start=0, step=1, limit=4
    $region2: #{tpu_custom_call.1} parent=1 // loop_pre_header
      _
    $region3: #{tpu_custom_call.1} parent=1 // loop_header
      %s23 = sphi 0, %s27
      %p24 = scmp.ge.s32.totalorder %s23, 4
      %s33 = sphi 0, %s35
      %s36 = sphi 0, %s33
      %s37 = sphi 0, %s36
      %s53 = sphi 0, %s37
      %s57 = sphi 0, %s57
      %s59 = sphi 0, %s57
      %s60 = sphi 0, %s59
      %s74 = sphi 0, %s60
      %s78 = sphi 0, %s78
      %s80 = sphi 0, %s78
      %s81 = sphi 0, %s80
      %s95 = sphi 0, %s81
      %s99 = sphi 0, %s99
      %s101 = sphi 0, %s99
      %s102 = sphi 0, %s101
      %s116 = sphi 0, %s102
      %s120 = sphi 0, %s120
      %s122 = sphi 0, %s120
      %s123 = sphi 0, %s122
      %s137 = sphi 0, %s123
      %s141 = sphi 0, %s141
      %s143 = sphi 0, %s141
      %s144 = sphi 0, %s143
      %s158 = sphi 0, %s144
      %s162 = sphi 0, %s162
      %s164 = sphi 0, %s162
      %s165 = sphi 0, %s164
      %s179 = sphi 0, %s165
      %s183 = sphi 0, %s183
      %s185 = sphi 0, %s183
      %s186 = sphi 0, %s185
      %s200 = sphi 0, %s186
      %s204 = sphi 0, %s204
      %s206 = sphi 0, %s204
      %s207 = sphi 0, %s206
      %s221 = sphi 0, %s207
      %s227 = sphi 0, %s229
      %s230 = sphi 0, %s227
      %s231 = sphi 0, %s230
      %s247 = sphi 0, %s231
    $region4: #{tpu_custom_call.1} parent=1 // loop_header_branch
      %26 = sbr.rel (%p24) target = $region8
    $region5: #{tpu_custom_call.1} parent=1 // loop_body
      %s28 = ssub.s32 %s23, 1
      %s29 = ssub.s32 %s23, 2
      %s30 = sadd.s32 %s23, 1
      %s31 = ssub.s32 %s23, %s30
      %p32 = scmp.eq.s32.totalorder %s31, 0
      %s34 = sadd.s32 %s33, 1
      %s35 = scalar_select %p32, %s33, %s34
      %p38 = pneg %p32
      %p39 = scmp.eq.s32.totalorder %s23, 1
      %p40 = por %p38, %p39
      %p41 = scmp.ne.s32.totalorder %s33, %s36
      %p42 = scmp.eq.s32.totalorder %s23, 0
      %p43 = por %p41, %p42
      %p44 = scmp.ne.s32.totalorder %s33, %s36
      %p45 = scmp.eq.s32.totalorder %s28, 1
      %p46 = por %p44, %p45
      %p47 = scmp.ne.s32.totalorder %s36, %s37
      %p48 = scmp.eq.s32.totalorder %s28, 0
      %p49 = por %p47, %p48
      %p50 = scmp.ne.s32.totalorder %s36, %s37
      %p51 = scmp.eq.s32.totalorder %s29, 1
      %p52 = por %p50, %p51
      %p54 = scmp.ne.s32.totalorder %s37, %s53
      %p55 = scmp.eq.s32.totalorder %s29, 0
      %p56 = por %p54, %p55
      %s58 = sadd.s32 %s57, 1
      %p61 = scmp.eq.s32.totalorder %s23, 1
      %p62 = scmp.ne.s32.totalorder %s57, %s59
      %p63 = scmp.eq.s32.totalorder %s23, 0
      %p64 = por %p62, %p63
      %p65 = scmp.ne.s32.totalorder %s57, %s59
      %p66 = scmp.eq.s32.totalorder %s28, 1
      %p67 = por %p65, %p66
      %p68 = scmp.ne.s32.totalorder %s59, %s60
      %p69 = scmp.eq.s32.totalorder %s28, 0
      %p70 = por %p68, %p69
      %p71 = scmp.ne.s32.totalorder %s59, %s60
      %p72 = scmp.eq.s32.totalorder %s29, 1
      %p73 = por %p71, %p72
      %p75 = scmp.ne.s32.totalorder %s60, %s74
      %p76 = scmp.eq.s32.totalorder %s29, 0
      %p77 = por %p75, %p76
      %s79 = sadd.s32 %s78, 1
      %p82 = scmp.eq.s32.totalorder %s23, 1
      %p83 = scmp.ne.s32.totalorder %s78, %s80
      %p84 = scmp.eq.s32.totalorder %s23, 0
      %p85 = por %p83, %p84
      %p86 = scmp.ne.s32.totalorder %s78, %s80
      %p87 = scmp.eq.s32.totalorder %s28, 1
      %p88 = por %p86, %p87
      %p89 = scmp.ne.s32.totalorder %s80, %s81
      %p90 = scmp.eq.s32.totalorder %s28, 0
      %p91 = por %p89, %p90
      %p92 = scmp.ne.s32.totalorder %s80, %s81
      %p93 = scmp.eq.s32.totalorder %s29, 1
      %p94 = por %p92, %p93
      %p96 = scmp.ne.s32.totalorder %s81, %s95
      %p97 = scmp.eq.s32.totalorder %s29, 0
      %p98 = por %p96, %p97
      %s100 = sadd.s32 %s99, 1
      %p103 = scmp.eq.s32.totalorder %s23, 1
      %p104 = scmp.ne.s32.totalorder %s99, %s101
      %p105 = scmp.eq.s32.totalorder %s23, 0
      %p106 = por %p104, %p105
      %p107 = scmp.ne.s32.totalorder %s99, %s101
      %p108 = scmp.eq.s32.totalorder %s28, 1
      %p109 = por %p107, %p108
      %p110 = scmp.ne.s32.totalorder %s101, %s102
      %p111 = scmp.eq.s32.totalorder %s28, 0
      %p112 = por %p110, %p111
      %p113 = scmp.ne.s32.totalorder %s101, %s102
      %p114 = scmp.eq.s32.totalorder %s29, 1
      %p115 = por %p113, %p114
      %p117 = scmp.ne.s32.totalorder %s102, %s116
      %p118 = scmp.eq.s32.totalorder %s29, 0
      %p119 = por %p117, %p118
      %s121 = sadd.s32 %s120, 1
      %p124 = scmp.eq.s32.totalorder %s23, 1
      %p125 = scmp.ne.s32.totalorder %s120, %s122
      %p126 = scmp.eq.s32.totalorder %s23, 0
      %p127 = por %p125, %p126
      %p128 = scmp.ne.s32.totalorder %s120, %s122
      %p129 = scmp.eq.s32.totalorder %s28, 1
      %p130 = por %p128, %p129
      %p131 = scmp.ne.s32.totalorder %s122, %s123
      %p132 = scmp.eq.s32.totalorder %s28, 0
      %p133 = por %p131, %p132
      %p134 = scmp.ne.s32.totalorder %s122, %s123
      %p135 = scmp.eq.s32.totalorder %s29, 1
      %p136 = por %p134, %p135
      %p138 = scmp.ne.s32.totalorder %s123, %s137
      %p139 = scmp.eq.s32.totalorder %s29, 0
      %p140 = por %p138, %p139
      %s142 = sadd.s32 %s141, 1
      %p145 = scmp.eq.s32.totalorder %s23, 1
      %p146 = scmp.ne.s32.totalorder %s141, %s143
      %p147 = scmp.eq.s32.totalorder %s23, 0
      %p148 = por %p146, %p147
      %p149 = scmp.ne.s32.totalorder %s141, %s143
      %p150 = scmp.eq.s32.totalorder %s28, 1
      %p151 = por %p149, %p150
      %p152 = scmp.ne.s32.totalorder %s143, %s144
      %p153 = scmp.eq.s32.totalorder %s28, 0
      %p154 = por %p152, %p153
      %p155 = scmp.ne.s32.totalorder %s143, %s144
      %p156 = scmp.eq.s32.totalorder %s29, 1
      %p157 = por %p155, %p156
      %p159 = scmp.ne.s32.totalorder %s144, %s158
      %p160 = scmp.eq.s32.totalorder %s29, 0
      %p161 = por %p159, %p160
      %s163 = sadd.s32 %s162, 1
      %p166 = scmp.eq.s32.totalorder %s23, 1
      %p167 = scmp.ne.s32.totalorder %s162, %s164
      %p168 = scmp.eq.s32.totalorder %s23, 0
      %p169 = por %p167, %p168
      %p170 = scmp.ne.s32.totalorder %s162, %s164
      %p171 = scmp.eq.s32.totalorder %s28, 1
      %p172 = por %p170, %p171
      %p173 = scmp.ne.s32.totalorder %s164, %s165
      %p174 = scmp.eq.s32.totalorder %s28, 0
      %p175 = por %p173, %p174
      %p176 = scmp.ne.s32.totalorder %s164, %s165
      %p177 = scmp.eq.s32.totalorder %s29, 1
      %p178 = por %p176, %p177
      %p180 = scmp.ne.s32.totalorder %s165, %s179
      %p181 = scmp.eq.s32.totalorder %s29, 0
      %p182 = por %p180, %p181
      %s184 = sadd.s32 %s183, 1
      %p187 = scmp.eq.s32.totalorder %s23, 1
      %p188 = scmp.ne.s32.totalorder %s183, %s185
      %p189 = scmp.eq.s32.totalorder %s23, 0
      %p190 = por %p188, %p189
      %p191 = scmp.ne.s32.totalorder %s183, %s185
      %p192 = scmp.eq.s32.totalorder %s28, 1
      %p193 = por %p191, %p192
      %p194 = scmp.ne.s32.totalorder %s185, %s186
      %p195 = scmp.eq.s32.totalorder %s28, 0
      %p196 = por %p194, %p195
      %p197 = scmp.ne.s32.totalorder %s185, %s186
      %p198 = scmp.eq.s32.totalorder %s29, 1
      %p199 = por %p197, %p198
      %p201 = scmp.ne.s32.totalorder %s186, %s200
      %p202 = scmp.eq.s32.totalorder %s29, 0
      %p203 = por %p201, %p202
      %s205 = sadd.s32 %s204, 1
      %p208 = scmp.eq.s32.totalorder %s23, 1
      %p209 = scmp.ne.s32.totalorder %s204, %s206
      %p210 = scmp.eq.s32.totalorder %s23, 0
      %p211 = por %p209, %p210
      %p212 = scmp.ne.s32.totalorder %s204, %s206
      %p213 = scmp.eq.s32.totalorder %s28, 1
      %p214 = por %p212, %p213
      %p215 = scmp.ne.s32.totalorder %s206, %s207
      %p216 = scmp.eq.s32.totalorder %s28, 0
      %p217 = por %p215, %p216
      %p218 = scmp.ne.s32.totalorder %s206, %s207
      %p219 = scmp.eq.s32.totalorder %s29, 1
      %p220 = por %p218, %p219
      %p222 = scmp.ne.s32.totalorder %s207, %s221
      %p223 = scmp.eq.s32.totalorder %s29, 0
      %p224 = por %p222, %p223
      %s225 = ssub.s32 %s23, %s30
      %p226 = scmp.eq.s32.totalorder %s225, 0
      %s228 = sadd.s32 %s227, 1
      %s229 = scalar_select %p226, %s227, %s228
      %p232 = pneg %p226
      %p233 = scmp.eq.s32.totalorder %s23, 1
      %p234 = por %p232, %p233
      %p235 = scmp.ne.s32.totalorder %s227, %s230
      %p236 = scmp.eq.s32.totalorder %s23, 0
      %p237 = por %p235, %p236
      %p238 = scmp.ne.s32.totalorder %s227, %s230
      %p239 = scmp.eq.s32.totalorder %s28, 1
      %p240 = por %p238, %p239
      %p241 = scmp.ne.s32.totalorder %s230, %s231
      %p242 = scmp.eq.s32.totalorder %s28, 0
      %p243 = por %p241, %p242
      %p244 = scmp.ne.s32.totalorder %s230, %s231
      %p245 = scmp.eq.s32.totalorder %s29, 1
      %p246 = por %p244, %p245
      %p248 = scmp.ne.s32.totalorder %s231, %s247
      %p249 = scmp.eq.s32.totalorder %s29, 0
      %p250 = por %p248, %p249
      %p251 = scmp.le.s32.totalorder 1, %s23
      %p252 = scmp.lt.s32.totalorder %s23, 3
      %p253 = pnand %p251, %p252
      %p254 = pneg %p253
      // Predicated region
      $region9: #{tpu_custom_call.1} parent=5 // pred_check
        _
      $region10: #{tpu_custom_call.1} parent=5 // pred_check_branch
        %256 = sbr.rel (%p253) target = $region12
      $region11: #{tpu_custom_call.1} parent=5 // pred_region
        %s257 = ssub.s32 %s23, 1
        // Predicated region
        $region13: #{tpu_custom_call.1} parent=11 // pred_check
          %p258 = pneg %p70
        $region14: #{tpu_custom_call.1} parent=11 // pred_check_branch
          %260 = sbr.rel (%p258) target = $region16
        $region15: #{tpu_custom_call.1} parent=11 // pred_region
          %262 = vsyncadd [#allocation6], 0
          %s263 = sshll.u32 %s1, 4
          %s264 = int_to_ptr.hbm [resolvable:$true] %s263
          %s265 = sshll.u32 [#allocation5], 4
          %s266 = int_to_ptr.vmem [resolvable:$true] %s265
          %271 = dma.hbm_to_vmem [thread:$0]  %s264, 3072, %s266, [#allocation6], 192, 192, 12
        $region16: #{tpu_custom_call.1} parent=11 // pred_fallthru
          _
        // Predicated region
        $region17: #{tpu_custom_call.1} parent=11 // pred_check
          %p272 = pneg %p91
        $region18: #{tpu_custom_call.1} parent=11 // pred_check_branch
          %274 = sbr.rel (%p272) target = $region20
        $region19: #{tpu_custom_call.1} parent=11 // pred_region
          %276 = vsyncadd [#allocation6], 0
          %s278 = sshll.u32 %s2, 4
          %s279 = int_to_ptr.hbm [resolvable:$true] %s278
          %s280 = sshll.u32 [#allocation7], 4
          %s281 = int_to_ptr.vmem [resolvable:$true] %s280
          %283 = dma.hbm_to_vmem [thread:$0]  %s279, 48, %s281, [#allocation6]
        $region20: #{tpu_custom_call.1} parent=11 // pred_fallthru
          _
        // Predicated region
        $region21: #{tpu_custom_call.1} parent=11 // pred_check
          %p284 = pneg %p112
        $region22: #{tpu_custom_call.1} parent=11 // pred_check_branch
          %286 = sbr.rel (%p284) target = $region24
        $region23: #{tpu_custom_call.1} parent=11 // pred_region
          _
        $region24: #{tpu_custom_call.1} parent=11 // pred_fallthru
          _
        // Predicated region
        $region25: #{tpu_custom_call.1} parent=11 // pred_check
          %p287 = pneg %p133
        $region26: #{tpu_custom_call.1} parent=11 // pred_check_branch
          %289 = sbr.rel (%p287) target = $region28
        $region27: #{tpu_custom_call.1} parent=11 // pred_region
          %291 = vsyncadd [#allocation9], 0
          %s292 = sshll.u32 %s4, 4
          %s293 = int_to_ptr.hbm [resolvable:$true] %s292
          %s294 = sshll.u32 [#allocation8], 4
          %s295 = int_to_ptr.vmem [resolvable:$true] %s294
          %300 = dma.hbm_to_vmem [thread:$0]  %s293, 512, %s295, [#allocation9], 256, 256, 16
        $region28: #{tpu_custom_call.1} parent=11 // pred_fallthru
          _
        // Predicated region
        $region29: #{tpu_custom_call.1} parent=11 // pred_check
          %p301 = pneg %p154
        $region30: #{tpu_custom_call.1} parent=11 // pred_check_branch
          %303 = sbr.rel (%p301) target = $region32
        $region31: #{tpu_custom_call.1} parent=11 // pred_region
          _
        $region32: #{tpu_custom_call.1} parent=11 // pred_fallthru
          _
        // Predicated region
        $region33: #{tpu_custom_call.1} parent=11 // pred_check
          %p304 = pneg %p175
        $region34: #{tpu_custom_call.1} parent=11 // pred_check_branch
          %306 = sbr.rel (%p304) target = $region36
        $region35: #{tpu_custom_call.1} parent=11 // pred_region
          _
        $region36: #{tpu_custom_call.1} parent=11 // pred_fallthru
          _
        // Predicated region
        $region37: #{tpu_custom_call.1} parent=11 // pred_check
          %p307 = pneg %p196
        $region38: #{tpu_custom_call.1} parent=11 // pred_check_branch
          %309 = sbr.rel (%p307) target = $region40
        $region39: #{tpu_custom_call.1} parent=11 // pred_region
          %311 = vsyncadd [#allocation9], 0
          %s312 = sshll.u32 %s7, 4
          %s313 = int_to_ptr.hbm [resolvable:$true] %s312
          %s314 = sshll.u32 [#allocation10], 4
          %s315 = int_to_ptr.vmem [resolvable:$true] %s314
          %320 = dma.hbm_to_vmem [thread:$0]  %s313, 1024, %s315, [#allocation9], 64, 64, 4
        $region40: #{tpu_custom_call.1} parent=11 // pred_fallthru
          _
        // Predicated region
        $region41: #{tpu_custom_call.1} parent=11 // pred_check
          %p321 = pneg %p217
        $region42: #{tpu_custom_call.1} parent=11 // pred_check_branch
          %323 = sbr.rel (%p321) target = $region44
        $region43: #{tpu_custom_call.1} parent=11 // pred_region
          _
        $region44: #{tpu_custom_call.1} parent=11 // pred_fallthru
          _
      $region12: #{tpu_custom_call.1} parent=5 // pred_fallthru
        _
      %p324 = scmp.lt.s32.totalorder %s23, 2
      // Predicated region
      $region45: #{tpu_custom_call.1} parent=5 // pred_check
        %p325 = pneg %p324
      $region46: #{tpu_custom_call.1} parent=5 // pred_check_branch
        %327 = sbr.rel (%p325) target = $region48
      $region47: #{tpu_custom_call.1} parent=5 // pred_region
        // Predicated region
        $region49: #{tpu_custom_call.1} parent=47 // pred_check
          %p328 = pneg %p43
        $region50: #{tpu_custom_call.1} parent=47 // pred_check_branch
          %330 = sbr.rel (%p328) target = $region52
        $region51: #{tpu_custom_call.1} parent=47 // pred_region
          %s331 = sand.u32 %s33, 1
          %s332 = scalar_lea.sflag [#allocation3], %s331
          %s333 = sand.u32 %s33, 1
          %s334 = smul.addr %s333, 16
          %s335 = scalar_lea.vmem [#allocation2], %s334
          %s336 = smul.u32 2, %s23
          %338 = vsyncadd %s332, 0
          %s339 = smul.addr %s336, 2
          %s340 = smul.addr %s339, 4
          %s341 = scalar_lea.hbm %s0, %s340
          %s342 = sshll.u32 %s341, 4
          %s343 = int_to_ptr.hbm [resolvable:$true] %s342
          %s344 = sshll.u32 %s335, 4
          %s345 = int_to_ptr.vmem [resolvable:$true] %s344
          %350 = dma.hbm_to_vmem [thread:$0]  %s343, 256, %s345, %s332, 64, 64, 4
        $region52: #{tpu_custom_call.1} parent=47 // pred_fallthru
          _
      $region48: #{tpu_custom_call.1} parent=5 // pred_fallthru
        _
      %p351 = scmp.le.s32.totalorder 1, %s23
      %p352 = scmp.lt.s32.totalorder %s23, 3
      %p353 = pnand %p351, %p352
      %p354 = pneg %p353
      // Predicated region
      $region53: #{tpu_custom_call.1} parent=5 // pred_check
        _
      $region54: #{tpu_custom_call.1} parent=5 // pred_check_branch
        %356 = sbr.rel (%p353) target = $region56
      $region55: #{tpu_custom_call.1} parent=5 // pred_region
        %s357 = ssub.s32 %s23, 1
        %s358 = sand.u32 %s36, 1
        %s359 = scalar_lea.sflag [#allocation3], %s358
        %s360 = sand.u32 %s36, 1
        %s361 = smul.addr %s360, 16
        %s362 = scalar_lea.vmem [#allocation2], %s361
        // Predicated region
        $region57: #{tpu_custom_call.1} parent=55 // pred_check
          %p363 = pneg %p49
        $region58: #{tpu_custom_call.1} parent=55 // pred_check_branch
          %365 = sbr.rel (%p363) target = $region60
        $region59: #{tpu_custom_call.1} parent=55 // pred_region
          %367 = dma.done %s359, 256
        $region60: #{tpu_custom_call.1} parent=55 // pred_fallthru
          _
        // Predicated region
        $region61: #{tpu_custom_call.1} parent=55 // pred_check
          %p368 = pneg %p70
        $region62: #{tpu_custom_call.1} parent=55 // pred_check_branch
          %370 = sbr.rel (%p368) target = $region64
        $region63: #{tpu_custom_call.1} parent=55 // pred_region
          %372 = dma.done [#allocation6], 3072
        $region64: #{tpu_custom_call.1} parent=55 // pred_fallthru
          _
        // Predicated region
        $region65: #{tpu_custom_call.1} parent=55 // pred_check
          %p373 = pneg %p91
        $region66: #{tpu_custom_call.1} parent=55 // pred_check_branch
          %375 = sbr.rel (%p373) target = $region68
        $region67: #{tpu_custom_call.1} parent=55 // pred_region
          %377 = dma.done [#allocation6], 48
        $region68: #{tpu_custom_call.1} parent=55 // pred_fallthru
          _
        // Predicated region
        $region69: #{tpu_custom_call.1} parent=55 // pred_check
          %p378 = pneg %p133
        $region70: #{tpu_custom_call.1} parent=55 // pred_check_branch
          %380 = sbr.rel (%p378) target = $region72
        $region71: #{tpu_custom_call.1} parent=55 // pred_region
          %382 = dma.done [#allocation9], 512
        $region72: #{tpu_custom_call.1} parent=55 // pred_fallthru
          _
        // Predicated region
        $region73: #{tpu_custom_call.1} parent=55 // pred_check
          %p383 = pneg %p196
        $region74: #{tpu_custom_call.1} parent=55 // pred_check_branch
          %385 = sbr.rel (%p383) target = $region76
        $region75: #{tpu_custom_call.1} parent=55 // pred_region
          %387 = dma.done [#allocation9], 1024
        $region76: #{tpu_custom_call.1} parent=55 // pred_fallthru
          _
        %s388 = sand.u32 %s36, 1
        %s389 = scalar_lea.sflag [#allocation3], %s388
        %s390 = sand.u32 %s36, 1
        %s391 = smul.addr %s390, 16
        %s392 = scalar_lea.vmem [#allocation2], %s391
        %p393 = pneg %p49
        %p394 = pneg %p46
        %p395 = pneg %p70
        %p396 = pneg %p67
        %p397 = pneg %p91
        %p398 = pneg %p88
        %p399 = pneg %p112
        %p400 = pneg %p109
        %p401 = pneg %p133
        %p402 = pneg %p130
        %p403 = pneg %p154
        %p404 = pneg %p151
        %p405 = pneg %p175
        %p406 = pneg %p172
        %p407 = pneg %p196
        %p408 = pneg %p193
        %p409 = pneg %p217
        %p410 = pneg %p214
        %p411 = pneg %p243
        %p412 = pneg %p240
        %s413 = sand.u32 %s230, 1
        %s414 = scalar_lea.sflag [#allocation4], %s413
        %s415 = sand.u32 %s230, 1
        %s416 = smul.addr %s415, 32
        %s417 = scalar_lea.vmem [#allocation11], %s416
        %s418 = smul.u32 2, %s28
        %s419 = smul.u32 2, %s28
        %v420 = vld [vmem:[%s362] sm:$0xf]
        %v421 = vld [vmem:[%s362 + $0x4] sm:$0xf]
        %v422 = vld [vmem:[%s362 + $0x8] sm:$0xf]
        %v423 = vld [vmem:[%s362 + $0xc] sm:$0xf]
        %v424 = vld [vmem:[#allocation5] sm:$0xff]
        %v425 = vld [vmem:[#allocation5 + $0x8] sm:$0xf]
        %v426 = vld [vmem:[#allocation5 + $0xc] sm:$0xff]
        %v427 = vld [vmem:[#allocation5 + $0x14] sm:$0xf]
        %v428 = vld [vmem:[#allocation5 + $0x18] sm:$0xff]
        %v429 = vld [vmem:[#allocation5 + $0x20] sm:$0xf]
        %v430 = vld [vmem:[#allocation5 + $0x24] sm:$0xff]
        %v431 = vld [vmem:[#allocation5 + $0x2c] sm:$0xf]
        %v432 = vld [vmem:[#allocation5 + $0x30] sm:$0xff]
        %v433 = vld [vmem:[#allocation5 + $0x38] sm:$0xf]
        %v434 = vld [vmem:[#allocation5 + $0x3c] sm:$0xff]
        %v435 = vld [vmem:[#allocation5 + $0x44] sm:$0xf]
        %v436 = vld [vmem:[#allocation5 + $0x48] sm:$0xff]
        %v437 = vld [vmem:[#allocation5 + $0x50] sm:$0xf]
        %v438 = vld [vmem:[#allocation5 + $0x54] sm:$0xff]
        %v439 = vld [vmem:[#allocation5 + $0x5c] sm:$0xf]
        %v440 = vld [vmem:[#allocation5 + $0x60] sm:$0xff]
        %v441 = vld [vmem:[#allocation5 + $0x68] sm:$0xf]
        %v442 = vld [vmem:[#allocation5 + $0x6c] sm:$0xff]
        %v443 = vld [vmem:[#allocation5 + $0x74] sm:$0xf]
        %v444 = vld [vmem:[#allocation5 + $0x78] sm:$0xff]
        %v445 = vld [vmem:[#allocation5 + $0x80] sm:$0xf]
        %v446 = vld [vmem:[#allocation5 + $0x84] sm:$0xff]
        %v447 = vld [vmem:[#allocation5 + $0x8c] sm:$0xf]
        %v448 = vld [vmem:[#allocation5 + $0x90] sm:$0xff]
        %v449 = vld [vmem:[#allocation5 + $0x98] sm:$0xf]
        %v450 = vld [vmem:[#allocation5 + $0x9c] sm:$0xff]
        %v451 = vld [vmem:[#allocation5 + $0xa4] sm:$0xf]
        %v452 = vld [vmem:[#allocation5 + $0xa8] sm:$0xff]
        %v453 = vld [vmem:[#allocation5 + $0xb0] sm:$0xf]
        %v454 = vld [vmem:[#allocation5 + $0xb4] sm:$0xff]
        %v455 = vld [vmem:[#allocation5 + $0xbc] sm:$0xf]
        %v456 = vld [vmem:[#allocation7] sm:$0x7]
        %v458 = vperm.slane %v456, 0
        %v459 = vperm.slane %v456, 1
        %v460 = vperm.slane %v456, 2
        %v468 = vunpack.c.l.b16 %v420
        %v469 = vunpack.c.l.b16 %v421
        %v470 = vunpack.c.l.b16 %v422
        %v471 = vunpack.c.l.b16 %v423
        %v472 = vpack.c.b16 %v469, %v468
        %v473 = vpack.c.b16 %v471, %v470
        %v508 = vunpack.c.l.b16 %v424
        %v509 = vunpack.c.h.b16 %v424
        %v510 = vunpack.c.l.b16 %v425
        %v511 = vunpack.c.l.b16 %v426
        %v512 = vunpack.c.h.b16 %v426
        %v513 = vunpack.c.l.b16 %v427
        %v514 = vunpack.c.l.b16 %v428
        %v515 = vunpack.c.h.b16 %v428
        %v516 = vunpack.c.l.b16 %v429
        %v517 = vunpack.c.l.b16 %v430
        %v518 = vunpack.c.h.b16 %v430
        %v519 = vunpack.c.l.b16 %v431
        %v520 = vunpack.c.l.b16 %v432
        %v521 = vunpack.c.h.b16 %v432
        %v522 = vunpack.c.l.b16 %v433
        %v523 = vunpack.c.l.b16 %v434
        %v524 = vunpack.c.h.b16 %v434
        %v525 = vunpack.c.l.b16 %v435
        %v526 = vunpack.c.l.b16 %v436
        %v527 = vunpack.c.h.b16 %v436
        %v528 = vunpack.c.l.b16 %v437
        %v529 = vunpack.c.l.b16 %v438
        %v530 = vunpack.c.h.b16 %v438
        %v531 = vunpack.c.l.b16 %v439
        %v532 = vunpack.c.l.b16 %v440
        %v533 = vunpack.c.h.b16 %v440
        %v534 = vunpack.c.l.b16 %v441
        %v535 = vunpack.c.l.b16 %v442
        %v536 = vunpack.c.h.b16 %v442
        %v537 = vunpack.c.l.b16 %v443
        %v538 = vunpack.c.l.b16 %v444
        %v539 = vunpack.c.h.b16 %v444
        %v540 = vunpack.c.l.b16 %v445
        %v541 = vunpack.c.l.b16 %v446
        %v542 = vunpack.c.h.b16 %v446
        %v543 = vunpack.c.l.b16 %v447
        %v544 = vunpack.c.l.b16 %v448
        %v545 = vunpack.c.h.b16 %v448
        %v546 = vunpack.c.l.b16 %v449
        %v547 = vunpack.c.l.b16 %v450
        %v548 = vunpack.c.h.b16 %v450
        %v549 = vunpack.c.l.b16 %v451
        %v550 = vunpack.c.l.b16 %v452
        %v551 = vunpack.c.h.b16 %v452
        %v552 = vunpack.c.l.b16 %v453
        %v553 = vunpack.c.l.b16 %v454
        %v554 = vunpack.c.h.b16 %v454
        %v555 = vunpack.c.l.b16 %v455
        %v556 = vpack.c.b16 %v511, %v508
        %v557 = vpack.c.b16 %v512, %v509
        %v558 = vpack.c.b16 %v513, %v510
        %v559 = vpack.c.b16 %v517, %v514
        %v560 = vpack.c.b16 %v518, %v515
        %v561 = vpack.c.b16 %v519, %v516
        %v562 = vpack.c.b16 %v523, %v520
        %v563 = vpack.c.b16 %v524, %v521
        %v564 = vpack.c.b16 %v525, %v522
        %v565 = vpack.c.b16 %v529, %v526
        %v566 = vpack.c.b16 %v530, %v527
        %v567 = vpack.c.b16 %v531, %v528
        %v568 = vpack.c.b16 %v535, %v532
        %v569 = vpack.c.b16 %v536, %v533
        %v570 = vpack.c.b16 %v537, %v534
        %v571 = vpack.c.b16 %v541, %v538
        %v572 = vpack.c.b16 %v542, %v539
        %v573 = vpack.c.b16 %v543, %v540
        %v574 = vpack.c.b16 %v547, %v544
        %v575 = vpack.c.b16 %v548, %v545
        %v576 = vpack.c.b16 %v549, %v546
        %v577 = vpack.c.b16 %v553, %v550
        %v578 = vpack.c.b16 %v554, %v551
        %v579 = vpack.c.b16 %v555, %v552
        %604 = vmatpush.bf16.msra.mxu0 %v577
        %605 = vmatpush.bf16.msra.mxu0 %v574
        %606 = vmatpush.bf16.msra.mxu0 %v571
        %607 = vmatpush.bf16.msra.mxu0 %v568
        %608 = vmatpush.bf16.msra.mxu0 %v565
        %609 = vmatpush.bf16.msra.mxu0 %v562
        %610 = vmatpush.bf16.msra.mxu0 %v559
        %611 = vmatpush.bf16.msra.mxu0 %v556
        %612 = vmatmul.bf16.gmra.mxu0 %v472
        %v613 = vpop.f32.mrf.mxu0
        %v614 = vadd.f32 %v458, %v613
        %v615 = vpop.f32.mrf.mxu0
        %v616 = vadd.f32 %v458, %v615
        %617 = vmatmul.bf16.gmra.mxu0 %v473
        %v618 = vpop.f32.mrf.mxu0
        %v619 = vadd.f32 %v458, %v618
        %v620 = vpop.f32.mrf.mxu0
        %v621 = vadd.f32 %v458, %v620
        %622 = vdwg.mxu0
        %623 = vmatpush.bf16.msra.mxu0 %v578
        %624 = vmatpush.bf16.msra.mxu0 %v575
        %625 = vmatpush.bf16.msra.mxu0 %v572
        %626 = vmatpush.bf16.msra.mxu0 %v569
        %627 = vmatpush.bf16.msra.mxu0 %v566
        %628 = vmatpush.bf16.msra.mxu0 %v563
        %629 = vmatpush.bf16.msra.mxu0 %v560
        %630 = vmatpush.bf16.msra.mxu0 %v557
        %631 = vmatmul.bf16.gmra.mxu0 %v472
        %v632 = vpop.f32.mrf.mxu0
        %v633 = vadd.f32 %v459, %v632
        %v634 = vpop.f32.mrf.mxu0
        %v635 = vadd.f32 %v459, %v634
        %636 = vmatmul.bf16.gmra.mxu0 %v473
        %v637 = vpop.f32.mrf.mxu0
        %v638 = vadd.f32 %v459, %v637
        %v639 = vpop.f32.mrf.mxu0
        %v640 = vadd.f32 %v459, %v639
        %641 = vdwg.mxu0
        %642 = vmatpush.bf16.msra.mxu0 %v579
        %643 = vmatpush.bf16.msra.mxu0 %v576
        %644 = vmatpush.bf16.msra.mxu0 %v573
        %645 = vmatpush.bf16.msra.mxu0 %v570
        %646 = vmatpush.bf16.msra.mxu0 %v567
        %647 = vmatpush.bf16.msra.mxu0 %v564
        %648 = vmatpush.bf16.msra.mxu0 %v561
        %649 = vmatpush.bf16.msra.mxu0 %v558
        %650 = vmatmul.bf16.gmra.mxu0 %v472
        %v651 = vpop.f32.mrf.mxu0
        %v652 = vadd.f32 %v460, %v651
        %v653 = vpop.f32.mrf.mxu0
        %v654 = vadd.f32 %v460, %v653
        %655 = vmatmul.bf16.gmra.mxu0 %v473
        %v656 = vpop.f32.mrf.mxu0
        %v657 = vadd.f32 %v460, %v656
        %v658 = vpop.f32.mrf.mxu0
        %v659 = vadd.f32 %v460, %v658
        %660 = vdwg.mxu0
        %v661 = vpack.c.bf16 %v614, %v614
        %v662 = vpack.c.bf16 %v616, %v616
        %v663 = vpack.c.bf16 %v619, %v619
        %v664 = vpack.c.bf16 %v621, %v621
        %v665 = vpack.c.bf16 %v633, %v633
        %v666 = vpack.c.bf16 %v635, %v635
        %v667 = vpack.c.bf16 %v638, %v638
        %v668 = vpack.c.bf16 %v640, %v640
        %v669 = vpack.c.bf16 %v652, %v652
        %v670 = vpack.c.bf16 %v654, %v654
        %v671 = vpack.c.bf16 %v657, %v657
        %v672 = vpack.c.bf16 %v659, %v659
        %v673 = vld [vmem:[%s3] sm:$0xf]
        %v674 = vld [vmem:[%s3 + $0x4] sm:$0xf]
        %v675 = vld [vmem:[%s3 + $0x8] sm:$0xf]
        %v676 = vld [vmem:[%s3 + $0xc] sm:$0xf]
        %v677 = vld [vmem:[%s3 + $0x10] sm:$0xf]
        %v678 = vld [vmem:[%s3 + $0x14] sm:$0xf]
        %v679 = vld [vmem:[%s3 + $0x18] sm:$0xf]
        %v680 = vld [vmem:[%s3 + $0x1c] sm:$0xf]
        %v681 = vld [vmem:[%s3 + $0x20] sm:$0xf]
        %v682 = vld [vmem:[%s3 + $0x24] sm:$0xf]
        %v683 = vld [vmem:[%s3 + $0x28] sm:$0xf]
        %v684 = vld [vmem:[%s3 + $0x2c] sm:$0xf]
        %v685 = vld [vmem:[%s3 + $0x30] sm:$0xf]
        %v686 = vld [vmem:[%s3 + $0x34] sm:$0xf]
        %v687 = vld [vmem:[%s3 + $0x38] sm:$0xf]
        %v688 = vld [vmem:[%s3 + $0x3c] sm:$0xf]
        %v689 = vld [vmem:[%s3 + $0x40] sm:$0xf]
        %v690 = vld [vmem:[%s3 + $0x44] sm:$0xf]
        %v691 = vld [vmem:[%s3 + $0x48] sm:$0xf]
        %v692 = vld [vmem:[%s3 + $0x4c] sm:$0xf]
        %v693 = vld [vmem:[%s3 + $0x50] sm:$0xf]
        %v694 = vld [vmem:[%s3 + $0x54] sm:$0xf]
        %v695 = vld [vmem:[%s3 + $0x58] sm:$0xf]
        %v696 = vld [vmem:[%s3 + $0x5c] sm:$0xf]
        %v697 = vld [vmem:[%s3 + $0x60] sm:$0xf]
        %v698 = vld [vmem:[%s3 + $0x64] sm:$0xf]
        %v699 = vld [vmem:[%s3 + $0x68] sm:$0xf]
        %v700 = vld [vmem:[%s3 + $0x6c] sm:$0xf]
        %v701 = vld [vmem:[%s3 + $0x70] sm:$0xf]
        %v702 = vld [vmem:[%s3 + $0x74] sm:$0xf]
        %v703 = vld [vmem:[%s3 + $0x78] sm:$0xf]
        %v704 = vld [vmem:[%s3 + $0x7c] sm:$0xf]
        %v709 = vunpack.c.l.b16 %v665
        %v710 = vunpack.c.l.b16 %v666
        %v711 = vunpack.c.l.b16 %v667
        %v712 = vunpack.c.l.b16 %v668
        %v713 = vpack.c.b16 %v710, %v709
        %v714 = vpack.c.b16 %v712, %v711
        %v717 = vunpack.c.l.bf16 %v713
        %v718 = vunpack.c.h.bf16 %v713
        %v719 = vunpack.c.l.bf16 %v714
        %v720 = vunpack.c.h.bf16 %v714
        %v721 = vunpack.c.l.bf16 %v673
        %v722 = vunpack.c.l.bf16 %v674
        %v723 = vunpack.c.l.bf16 %v675
        %v724 = vunpack.c.l.bf16 %v676
        %v725 = vunpack.c.l.bf16 %v677
        %v726 = vunpack.c.l.bf16 %v678
        %v727 = vunpack.c.l.bf16 %v679
        %v728 = vunpack.c.l.bf16 %v680
        %v729 = vunpack.c.l.bf16 %v681
        %v730 = vunpack.c.l.bf16 %v682
        %v731 = vunpack.c.l.bf16 %v683
        %v732 = vunpack.c.l.bf16 %v684
        %v733 = vunpack.c.l.bf16 %v685
        %v734 = vunpack.c.l.bf16 %v686
        %v735 = vunpack.c.l.bf16 %v687
        %v736 = vunpack.c.l.bf16 %v688
        %v737 = vunpack.c.l.bf16 %v689
        %v738 = vunpack.c.l.bf16 %v690
        %v739 = vunpack.c.l.bf16 %v691
        %v740 = vunpack.c.l.bf16 %v692
        %v741 = vunpack.c.l.bf16 %v693
        %v742 = vunpack.c.l.bf16 %v694
        %v743 = vunpack.c.l.bf16 %v695
        %v744 = vunpack.c.l.bf16 %v696
        %v745 = vunpack.c.l.bf16 %v697
        %v746 = vunpack.c.l.bf16 %v698
        %v747 = vunpack.c.l.bf16 %v699
        %v748 = vunpack.c.l.bf16 %v700
        %v749 = vunpack.c.l.bf16 %v701
        %v750 = vunpack.c.l.bf16 %v702
        %v751 = vunpack.c.l.bf16 %v703
        %v752 = vunpack.c.l.bf16 %v704
        %v753 = vmul.f32 %v717, %v721
        %v754 = vmul.f32 %v718, %v722
        %v755 = vmul.f32 %v717, %v723
        %v756 = vmul.f32 %v718, %v724
        %v757 = vmul.f32 %v717, %v725
        %v758 = vmul.f32 %v718, %v726
        %v759 = vmul.f32 %v717, %v727
        %v760 = vmul.f32 %v718, %v728
        %v761 = vmul.f32 %v717, %v729
        %v762 = vmul.f32 %v718, %v730
        %v763 = vmul.f32 %v717, %v731
        %v764 = vmul.f32 %v718, %v732
        %v765 = vmul.f32 %v717, %v733
        %v766 = vmul.f32 %v718, %v734
        %v767 = vmul.f32 %v717, %v735
        %v768 = vmul.f32 %v718, %v736
        %v769 = vmul.f32 %v717, %v737
        %v770 = vmul.f32 %v718, %v738
        %v771 = vmul.f32 %v717, %v739
        %v772 = vmul.f32 %v718, %v740
        %v773 = vmul.f32 %v717, %v741
        %v774 = vmul.f32 %v718, %v742
        %v775 = vmul.f32 %v717, %v743
        %v776 = vmul.f32 %v718, %v744
        %v777 = vmul.f32 %v717, %v745
        %v778 = vmul.f32 %v718, %v746
        %v779 = vmul.f32 %v717, %v747
        %v780 = vmul.f32 %v718, %v748
        %v781 = vmul.f32 %v717, %v749
        %v782 = vmul.f32 %v718, %v750
        %v783 = vmul.f32 %v717, %v751
        %v784 = vmul.f32 %v718, %v752
        %v785 = vmul.f32 %v719, %v721
        %v786 = vmul.f32 %v720, %v722
        %v787 = vmul.f32 %v719, %v723
        %v788 = vmul.f32 %v720, %v724
        %v789 = vmul.f32 %v719, %v725
        %v790 = vmul.f32 %v720, %v726
        %v791 = vmul.f32 %v719, %v727
        %v792 = vmul.f32 %v720, %v728
        %v793 = vmul.f32 %v719, %v729
        %v794 = vmul.f32 %v720, %v730
        %v795 = vmul.f32 %v719, %v731
        %v796 = vmul.f32 %v720, %v732
        %v797 = vmul.f32 %v719, %v733
        %v798 = vmul.f32 %v720, %v734
        %v799 = vmul.f32 %v719, %v735
        %v800 = vmul.f32 %v720, %v736
        %v801 = vmul.f32 %v719, %v737
        %v802 = vmul.f32 %v720, %v738
        %v803 = vmul.f32 %v719, %v739
        %v804 = vmul.f32 %v720, %v740
        %v805 = vmul.f32 %v719, %v741
        %v806 = vmul.f32 %v720, %v742
        %v807 = vmul.f32 %v719, %v743
        %v808 = vmul.f32 %v720, %v744
        %v809 = vmul.f32 %v719, %v745
        %v810 = vmul.f32 %v720, %v746
        %v811 = vmul.f32 %v719, %v747
        %v812 = vmul.f32 %v720, %v748
        %v813 = vmul.f32 %v719, %v749
        %v814 = vmul.f32 %v720, %v750
        %v815 = vmul.f32 %v719, %v751
        %v816 = vmul.f32 %v720, %v752
        %v817 = vpack.c.bf16 %v753, %v753
        %v818 = vpack.c.bf16 %v754, %v754
        %v819 = vpack.c.bf16 %v755, %v755
        %v820 = vpack.c.bf16 %v756, %v756
        %v821 = vpack.c.bf16 %v757, %v757
        %v822 = vpack.c.bf16 %v758, %v758
        %v823 = vpack.c.bf16 %v759, %v759
        %v824 = vpack.c.bf16 %v760, %v760
        %v825 = vpack.c.bf16 %v761, %v761
        %v826 = vpack.c.bf16 %v762, %v762
        %v827 = vpack.c.bf16 %v763, %v763
        %v828 = vpack.c.bf16 %v764, %v764
        %v829 = vpack.c.bf16 %v765, %v765
        %v830 = vpack.c.bf16 %v766, %v766
        %v831 = vpack.c.bf16 %v767, %v767
        %v832 = vpack.c.bf16 %v768, %v768
        %v833 = vpack.c.bf16 %v769, %v769
        %v834 = vpack.c.bf16 %v770, %v770
        %v835 = vpack.c.bf16 %v771, %v771
        %v836 = vpack.c.bf16 %v772, %v772
        %v837 = vpack.c.bf16 %v773, %v773
        %v838 = vpack.c.bf16 %v774, %v774
        %v839 = vpack.c.bf16 %v775, %v775
        %v840 = vpack.c.bf16 %v776, %v776
        %v841 = vpack.c.bf16 %v777, %v777
        %v842 = vpack.c.bf16 %v778, %v778
        %v843 = vpack.c.bf16 %v779, %v779
        %v844 = vpack.c.bf16 %v780, %v780
        %v845 = vpack.c.bf16 %v781, %v781
        %v846 = vpack.c.bf16 %v782, %v782
        %v847 = vpack.c.bf16 %v783, %v783
        %v848 = vpack.c.bf16 %v784, %v784
        %v849 = vpack.c.bf16 %v785, %v785
        %v850 = vpack.c.bf16 %v786, %v786
        %v851 = vpack.c.bf16 %v787, %v787
        %v852 = vpack.c.bf16 %v788, %v788
        %v853 = vpack.c.bf16 %v789, %v789
        %v854 = vpack.c.bf16 %v790, %v790
        %v855 = vpack.c.bf16 %v791, %v791
        %v856 = vpack.c.bf16 %v792, %v792
        %v857 = vpack.c.bf16 %v793, %v793
        %v858 = vpack.c.bf16 %v794, %v794
        %v859 = vpack.c.bf16 %v795, %v795
        %v860 = vpack.c.bf16 %v796, %v796
        %v861 = vpack.c.bf16 %v797, %v797
        %v862 = vpack.c.bf16 %v798, %v798
        %v863 = vpack.c.bf16 %v799, %v799
        %v864 = vpack.c.bf16 %v800, %v800
        %v865 = vpack.c.bf16 %v801, %v801
        %v866 = vpack.c.bf16 %v802, %v802
        %v867 = vpack.c.bf16 %v803, %v803
        %v868 = vpack.c.bf16 %v804, %v804
        %v869 = vpack.c.bf16 %v805, %v805
        %v870 = vpack.c.bf16 %v806, %v806
        %v871 = vpack.c.bf16 %v807, %v807
        %v872 = vpack.c.bf16 %v808, %v808
        %v873 = vpack.c.bf16 %v809, %v809
        %v874 = vpack.c.bf16 %v810, %v810
        %v875 = vpack.c.bf16 %v811, %v811
        %v876 = vpack.c.bf16 %v812, %v812
        %v877 = vpack.c.bf16 %v813, %v813
        %v878 = vpack.c.bf16 %v814, %v814
        %v879 = vpack.c.bf16 %v815, %v815
        %v880 = vpack.c.bf16 %v816, %v816
        %v881 = vld [vmem:[#allocation8] sm:$0xff]
        %v882 = vld [vmem:[#allocation8 + $0x8] sm:$0xff]
        %v883 = vld [vmem:[#allocation8 + $0x10] sm:$0xff]
        %v884 = vld [vmem:[#allocation8 + $0x18] sm:$0xff]
        %v887 = vunpack.c.l.b16 %v661
        %v888 = vunpack.c.l.b16 %v662
        %v889 = vpack.c.b16 %v888, %v887
        %v923 = vunpack.c.l.b16 %v817
        %v924 = vunpack.c.l.b16 %v818
        %v925 = vunpack.c.l.b16 %v819
        %v926 = vunpack.c.l.b16 %v820
        %v927 = vunpack.c.l.b16 %v821
        %v928 = vunpack.c.l.b16 %v822
        %v929 = vunpack.c.l.b16 %v823
        %v930 = vunpack.c.l.b16 %v824
        %v931 = vunpack.c.l.b16 %v825
        %v932 = vunpack.c.l.b16 %v826
        %v933 = vunpack.c.l.b16 %v827
        %v934 = vunpack.c.l.b16 %v828
        %v935 = vunpack.c.l.b16 %v829
        %v936 = vunpack.c.l.b16 %v830
        %v937 = vunpack.c.l.b16 %v831
        %v938 = vunpack.c.l.b16 %v832
        %v939 = vunpack.c.l.b16 %v833
        %v940 = vunpack.c.l.b16 %v834
        %v941 = vunpack.c.l.b16 %v835
        %v942 = vunpack.c.l.b16 %v836
        %v943 = vunpack.c.l.b16 %v837
        %v944 = vunpack.c.l.b16 %v838
        %v945 = vunpack.c.l.b16 %v839
        %v946 = vunpack.c.l.b16 %v840
        %v947 = vunpack.c.l.b16 %v841
        %v948 = vunpack.c.l.b16 %v842
        %v949 = vunpack.c.l.b16 %v843
        %v950 = vunpack.c.l.b16 %v844
        %v951 = vunpack.c.l.b16 %v845
        %v952 = vunpack.c.l.b16 %v846
        %v953 = vunpack.c.l.b16 %v847
        %v954 = vunpack.c.l.b16 %v848
        %v955 = vpack.c.b16 %v924, %v923
        %v956 = vpack.c.b16 %v926, %v925
        %v957 = vpack.c.b16 %v928, %v927
        %v958 = vpack.c.b16 %v930, %v929
        %v959 = vpack.c.b16 %v932, %v931
        %v960 = vpack.c.b16 %v934, %v933
        %v961 = vpack.c.b16 %v936, %v935
        %v962 = vpack.c.b16 %v938, %v937
        %v963 = vpack.c.b16 %v940, %v939
        %v964 = vpack.c.b16 %v942, %v941
        %v965 = vpack.c.b16 %v944, %v943
        %v966 = vpack.c.b16 %v946, %v945
        %v967 = vpack.c.b16 %v948, %v947
        %v968 = vpack.c.b16 %v950, %v949
        %v969 = vpack.c.b16 %v952, %v951
        %v970 = vpack.c.b16 %v954, %v953
        %987 = vmatpush.bf16.xpose.msra.mxu0 %v962
        %988 = vmatpush.bf16.xpose.msra.mxu0 %v961
        %989 = vmatpush.bf16.xpose.msra.mxu0 %v960
        %990 = vmatpush.bf16.xpose.msra.mxu0 %v959
        %991 = vmatpush.bf16.xpose.msra.mxu0 %v958
        %992 = vmatpush.bf16.xpose.msra.mxu0 %v957
        %993 = vmatpush.bf16.xpose.msra.mxu0 %v956
        %994 = vmatpush.bf16.xpose.msra.mxu0 %v955
        %995 = vmatmul.bf16.gmra.mxu0 %v889
        %v996 = vpop.f32.mrf.mxu0
        %v997 = vadd.f32 %v881, %v996
        %v998 = vpop.f32.mrf.mxu0
        %v999 = vadd.f32 %v883, %v998
        %1000 = vdwg.mxu0
        %1001 = vmatpush.bf16.xpose.msra.mxu0 %v970
        %1002 = vmatpush.bf16.xpose.msra.mxu0 %v969
        %1003 = vmatpush.bf16.xpose.msra.mxu0 %v968
        %1004 = vmatpush.bf16.xpose.msra.mxu0 %v967
        %1005 = vmatpush.bf16.xpose.msra.mxu0 %v966
        %1006 = vmatpush.bf16.xpose.msra.mxu0 %v965
        %1007 = vmatpush.bf16.xpose.msra.mxu0 %v964
        %1008 = vmatpush.bf16.xpose.msra.mxu0 %v963
        %1009 = vmatmul.bf16.gmra.mxu0 %v889
        %v1010 = vpop.f32.mrf.mxu0
        %v1011 = vadd.f32 %v882, %v1010
        %v1012 = vpop.f32.mrf.mxu0
        %v1013 = vadd.f32 %v884, %v1012
        %1014 = vdwg.mxu0
        %v1017 = vunpack.c.l.b16 %v663
        %v1018 = vunpack.c.l.b16 %v664
        %v1019 = vpack.c.b16 %v1018, %v1017
        %v1053 = vunpack.c.l.b16 %v849
        %v1054 = vunpack.c.l.b16 %v850
        %v1055 = vunpack.c.l.b16 %v851
        %v1056 = vunpack.c.l.b16 %v852
        %v1057 = vunpack.c.l.b16 %v853
        %v1058 = vunpack.c.l.b16 %v854
        %v1059 = vunpack.c.l.b16 %v855
        %v1060 = vunpack.c.l.b16 %v856
        %v1061 = vunpack.c.l.b16 %v857
        %v1062 = vunpack.c.l.b16 %v858
        %v1063 = vunpack.c.l.b16 %v859
        %v1064 = vunpack.c.l.b16 %v860
        %v1065 = vunpack.c.l.b16 %v861
        %v1066 = vunpack.c.l.b16 %v862
        %v1067 = vunpack.c.l.b16 %v863
        %v1068 = vunpack.c.l.b16 %v864
        %v1069 = vunpack.c.l.b16 %v865
        %v1070 = vunpack.c.l.b16 %v866
        %v1071 = vunpack.c.l.b16 %v867
        %v1072 = vunpack.c.l.b16 %v868
        %v1073 = vunpack.c.l.b16 %v869
        %v1074 = vunpack.c.l.b16 %v870
        %v1075 = vunpack.c.l.b16 %v871
        %v1076 = vunpack.c.l.b16 %v872
        %v1077 = vunpack.c.l.b16 %v873
        %v1078 = vunpack.c.l.b16 %v874
        %v1079 = vunpack.c.l.b16 %v875
        %v1080 = vunpack.c.l.b16 %v876
        %v1081 = vunpack.c.l.b16 %v877
        %v1082 = vunpack.c.l.b16 %v878
        %v1083 = vunpack.c.l.b16 %v879
        %v1084 = vunpack.c.l.b16 %v880
        %v1085 = vpack.c.b16 %v1054, %v1053
        %v1086 = vpack.c.b16 %v1056, %v1055
        %v1087 = vpack.c.b16 %v1058, %v1057
        %v1088 = vpack.c.b16 %v1060, %v1059
        %v1089 = vpack.c.b16 %v1062, %v1061
        %v1090 = vpack.c.b16 %v1064, %v1063
        %v1091 = vpack.c.b16 %v1066, %v1065
        %v1092 = vpack.c.b16 %v1068, %v1067
        %v1093 = vpack.c.b16 %v1070, %v1069
        %v1094 = vpack.c.b16 %v1072, %v1071
        %v1095 = vpack.c.b16 %v1074, %v1073
        %v1096 = vpack.c.b16 %v1076, %v1075
        %v1097 = vpack.c.b16 %v1078, %v1077
        %v1098 = vpack.c.b16 %v1080, %v1079
        %v1099 = vpack.c.b16 %v1082, %v1081
        %v1100 = vpack.c.b16 %v1084, %v1083
        %1117 = vmatpush.bf16.xpose.msra.mxu0 %v1092
        %1118 = vmatpush.bf16.xpose.msra.mxu0 %v1091
        %1119 = vmatpush.bf16.xpose.msra.mxu0 %v1090
        %1120 = vmatpush.bf16.xpose.msra.mxu0 %v1089
        %1121 = vmatpush.bf16.xpose.msra.mxu0 %v1088
        %1122 = vmatpush.bf16.xpose.msra.mxu0 %v1087
        %1123 = vmatpush.bf16.xpose.msra.mxu0 %v1086
        %1124 = vmatpush.bf16.xpose.msra.mxu0 %v1085
        %1125 = vmatmul.bf16.gmra.mxu0 %v1019
        %v1126 = vpop.f32.mrf.mxu0
        %v1127 = vadd.f32 %v881, %v1126
        %v1128 = vpop.f32.mrf.mxu0
        %v1129 = vadd.f32 %v883, %v1128
        %1130 = vdwg.mxu0
        %1131 = vmatpush.bf16.xpose.msra.mxu0 %v1100
        %1132 = vmatpush.bf16.xpose.msra.mxu0 %v1099
        %1133 = vmatpush.bf16.xpose.msra.mxu0 %v1098
        %1134 = vmatpush.bf16.xpose.msra.mxu0 %v1097
        %1135 = vmatpush.bf16.xpose.msra.mxu0 %v1096
        %1136 = vmatpush.bf16.xpose.msra.mxu0 %v1095
        %1137 = vmatpush.bf16.xpose.msra.mxu0 %v1094
        %1138 = vmatpush.bf16.xpose.msra.mxu0 %v1093
        %1139 = vmatmul.bf16.gmra.mxu0 %v1019
        %v1140 = vpop.f32.mrf.mxu0
        %v1141 = vadd.f32 %v882, %v1140
        %v1142 = vpop.f32.mrf.mxu0
        %v1143 = vadd.f32 %v884, %v1142
        %1144 = vdwg.mxu0
        %v1145 = vmax.f32 %v997, %v1011
        %1146 = vmax.xlane.f32.xlu0 %v1145
        %v1147 = vpop.xlane.xlu0 %1146
        %v1148 = vmax.f32 %v999, %v1013
        %1149 = vmax.xlane.f32.xlu0 %v1148
        %v1150 = vpop.xlane.xlu0 %1149
        %v1151 = vmax.f32 %v1127, %v1141
        %1152 = vmax.xlane.f32.xlu0 %v1151
        %v1153 = vpop.xlane.xlu0 %1152
        %v1154 = vmax.f32 %v1129, %v1143
        %1155 = vmax.xlane.f32.xlu0 %v1154
        %v1156 = vpop.xlane.xlu0 %1155
        %v1157 = vsub.f32 %v997, %v1147
        %v1158 = vsub.f32 %v1011, %v1147
        %v1159 = vsub.f32 %v999, %v1150
        %v1160 = vsub.f32 %v1013, %v1150
        %v1161 = vsub.f32 %v1127, %v1153
        %v1162 = vsub.f32 %v1141, %v1153
        %v1163 = vsub.f32 %v1129, %v1156
        %v1164 = vsub.f32 %v1143, %v1156
        %v1165 = vmul.f32 %v1157, 1.442695
        %v1166 = vpow.pop %v1165
        %v1167 = vmul.f32 %v1158, 1.442695
        %v1168 = vpow.pop %v1167
        %v1169 = vmul.f32 %v1159, 1.442695
        %v1170 = vpow.pop %v1169
        %v1171 = vmul.f32 %v1160, 1.442695
        %v1172 = vpow.pop %v1171
        %v1173 = vmul.f32 %v1161, 1.442695
        %v1174 = vpow.pop %v1173
        %v1175 = vmul.f32 %v1162, 1.442695
        %v1176 = vpow.pop %v1175
        %v1177 = vmul.f32 %v1163, 1.442695
        %v1178 = vpow.pop %v1177
        %v1179 = vmul.f32 %v1164, 1.442695
        %v1180 = vpow.pop %v1179
        %v1181 = vpack.c.bf16 %v1168, %v1166
        %v1182 = vpack.c.bf16 %v1172, %v1170
        %v1183 = vpack.c.bf16 %v1176, %v1174
        %v1184 = vpack.c.bf16 %v1180, %v1178
        %v1185 = vld [vmem:[%s5] sm:$0xf]
        %v1186 = vld [vmem:[%s5 + $0x4] sm:$0xf]
        %v1187 = vld [vmem:[%s5 + $0x8] sm:$0xf]
        %v1188 = vld [vmem:[%s5 + $0xc] sm:$0xf]
        %v1189 = vld [vmem:[%s5 + $0x10] sm:$0xf]
        %v1190 = vld [vmem:[%s5 + $0x14] sm:$0xf]
        %v1191 = vld [vmem:[%s5 + $0x18] sm:$0xf]
        %v1192 = vld [vmem:[%s5 + $0x1c] sm:$0xf]
        %v1193 = vld [vmem:[%s5 + $0x20] sm:$0xf]
        %v1194 = vld [vmem:[%s5 + $0x24] sm:$0xf]
        %v1195 = vld [vmem:[%s5 + $0x28] sm:$0xf]
        %v1196 = vld [vmem:[%s5 + $0x2c] sm:$0xf]
        %v1197 = vld [vmem:[%s5 + $0x30] sm:$0xf]
        %v1198 = vld [vmem:[%s5 + $0x34] sm:$0xf]
        %v1199 = vld [vmem:[%s5 + $0x38] sm:$0xf]
        %v1200 = vld [vmem:[%s5 + $0x3c] sm:$0xf]
        %v1201 = vld [vmem:[%s5 + $0x40] sm:$0xf]
        %v1202 = vld [vmem:[%s5 + $0x44] sm:$0xf]
        %v1203 = vld [vmem:[%s5 + $0x48] sm:$0xf]
        %v1204 = vld [vmem:[%s5 + $0x4c] sm:$0xf]
        %v1205 = vld [vmem:[%s5 + $0x50] sm:$0xf]
        %v1206 = vld [vmem:[%s5 + $0x54] sm:$0xf]
        %v1207 = vld [vmem:[%s5 + $0x58] sm:$0xf]
        %v1208 = vld [vmem:[%s5 + $0x5c] sm:$0xf]
        %v1209 = vld [vmem:[%s5 + $0x60] sm:$0xf]
        %v1210 = vld [vmem:[%s5 + $0x64] sm:$0xf]
        %v1211 = vld [vmem:[%s5 + $0x68] sm:$0xf]
        %v1212 = vld [vmem:[%s5 + $0x6c] sm:$0xf]
        %v1213 = vld [vmem:[%s5 + $0x70] sm:$0xf]
        %v1214 = vld [vmem:[%s5 + $0x74] sm:$0xf]
        %v1215 = vld [vmem:[%s5 + $0x78] sm:$0xf]
        %v1216 = vld [vmem:[%s5 + $0x7c] sm:$0xf]
        %v1221 = vunpack.c.l.b16 %v1181
        %v1222 = vunpack.c.h.b16 %v1181
        %v1223 = vunpack.c.l.b16 %v1182
        %v1224 = vunpack.c.h.b16 %v1182
        %v1225 = vunpack.c.l.b16 %v1183
        %v1226 = vunpack.c.h.b16 %v1183
        %v1227 = vunpack.c.l.b16 %v1184
        %v1228 = vunpack.c.h.b16 %v1184
        %v1229 = vpack.c.b16 %v1223, %v1221
        %v1230 = vpack.c.b16 %v1224, %v1222
        %v1231 = vpack.c.b16 %v1227, %v1225
        %v1232 = vpack.c.b16 %v1228, %v1226
        %v1269 = vunpack.c.l.b16 %v1185
        %v1270 = vunpack.c.l.b16 %v1186
        %v1271 = vunpack.c.l.b16 %v1187
        %v1272 = vunpack.c.l.b16 %v1188
        %v1273 = vunpack.c.l.b16 %v1189
        %v1274 = vunpack.c.l.b16 %v1190
        %v1275 = vunpack.c.l.b16 %v1191
        %v1276 = vunpack.c.l.b16 %v1192
        %v1277 = vunpack.c.l.b16 %v1193
        %v1278 = vunpack.c.l.b16 %v1194
        %v1279 = vunpack.c.l.b16 %v1195
        %v1280 = vunpack.c.l.b16 %v1196
        %v1281 = vunpack.c.l.b16 %v1197
        %v1282 = vunpack.c.l.b16 %v1198
        %v1283 = vunpack.c.l.b16 %v1199
        %v1284 = vunpack.c.l.b16 %v1200
        %v1285 = vunpack.c.l.b16 %v1201
        %v1286 = vunpack.c.l.b16 %v1202
        %v1287 = vunpack.c.l.b16 %v1203
        %v1288 = vunpack.c.l.b16 %v1204
        %v1289 = vunpack.c.l.b16 %v1205
        %v1290 = vunpack.c.l.b16 %v1206
        %v1291 = vunpack.c.l.b16 %v1207
        %v1292 = vunpack.c.l.b16 %v1208
        %v1293 = vunpack.c.l.b16 %v1209
        %v1294 = vunpack.c.l.b16 %v1210
        %v1295 = vunpack.c.l.b16 %v1211
        %v1296 = vunpack.c.l.b16 %v1212
        %v1297 = vunpack.c.l.b16 %v1213
        %v1298 = vunpack.c.l.b16 %v1214
        %v1299 = vunpack.c.l.b16 %v1215
        %v1300 = vunpack.c.l.b16 %v1216
        %v1301 = vpack.c.b16 %v1270, %v1269
        %v1302 = vpack.c.b16 %v1272, %v1271
        %v1303 = vpack.c.b16 %v1274, %v1273
        %v1304 = vpack.c.b16 %v1276, %v1275
        %v1305 = vpack.c.b16 %v1278, %v1277
        %v1306 = vpack.c.b16 %v1280, %v1279
        %v1307 = vpack.c.b16 %v1282, %v1281
        %v1308 = vpack.c.b16 %v1284, %v1283
        %v1309 = vpack.c.b16 %v1286, %v1285
        %v1310 = vpack.c.b16 %v1288, %v1287
        %v1311 = vpack.c.b16 %v1290, %v1289
        %v1312 = vpack.c.b16 %v1292, %v1291
        %v1313 = vpack.c.b16 %v1294, %v1293
        %v1314 = vpack.c.b16 %v1296, %v1295
        %v1315 = vpack.c.b16 %v1298, %v1297
        %v1316 = vpack.c.b16 %v1300, %v1299
        %1333 = vmatpush.bf16.msra.mxu0 %v1308
        %1334 = vmatpush.bf16.msra.mxu0 %v1307
        %1335 = vmatpush.bf16.msra.mxu0 %v1306
        %1336 = vmatpush.bf16.msra.mxu0 %v1305
        %1337 = vmatpush.bf16.msra.mxu0 %v1304
        %1338 = vmatpush.bf16.msra.mxu0 %v1303
        %1339 = vmatpush.bf16.msra.mxu0 %v1302
        %1340 = vmatpush.bf16.msra.mxu0 %v1301
        %1341 = vmatmul.bf16.gmra.mxu0 %v1229
        %v1342 = vpop.f32.mrf.mxu0
        %v1343 = vadd.f32 1e-30, %v1342
        %v1344 = vpop.f32.mrf.mxu0
        %v1345 = vadd.f32 1e-30, %v1344
        %1346 = vmatmul.bf16.gmra.mxu0 %v1231
        %v1347 = vpop.f32.mrf.mxu0
        %v1348 = vadd.f32 1e-30, %v1347
        %v1349 = vpop.f32.mrf.mxu0
        %v1350 = vadd.f32 1e-30, %v1349
        %1351 = vdwg.mxu0
        %1352 = vmatpush.bf16.msra.mxu0 %v1316
        %1353 = vmatpush.bf16.msra.mxu0 %v1315
        %1354 = vmatpush.bf16.msra.mxu0 %v1314
        %1355 = vmatpush.bf16.msra.mxu0 %v1313
        %1356 = vmatpush.bf16.msra.mxu0 %v1312
        %1357 = vmatpush.bf16.msra.mxu0 %v1311
        %1358 = vmatpush.bf16.msra.mxu0 %v1310
        %1359 = vmatpush.bf16.msra.mxu0 %v1309
        %1360 = vmatmul.bf16.gmra.mxu0 %v1230
        %v1361 = vpop.f32.mrf.mxu0
        %v1362 = vadd.f32 %v1343, %v1361
        %v1363 = vpop.f32.mrf.mxu0
        %v1364 = vadd.f32 %v1345, %v1363
        %1365 = vmatmul.bf16.gmra.mxu0 %v1232
        %v1366 = vpop.f32.mrf.mxu0
        %v1367 = vadd.f32 %v1348, %v1366
        %v1368 = vpop.f32.mrf.mxu0
        %v1369 = vadd.f32 %v1350, %v1368
        %1370 = vdwg.mxu0
        %v1371 = vrcp.pop %v1362
        %v1372 = vrcp.pop %v1364
        %v1373 = vrcp.pop %v1367
        %v1374 = vrcp.pop %v1369
        %v1379 = vunpack.c.l.b16 %v669
        %v1380 = vunpack.c.l.b16 %v670
        %v1381 = vunpack.c.l.b16 %v671
        %v1382 = vunpack.c.l.b16 %v672
        %v1383 = vpack.c.b16 %v1380, %v1379
        %v1384 = vpack.c.b16 %v1382, %v1381
        %v1387 = vunpack.c.l.bf16 %v1383
        %v1388 = vunpack.c.h.bf16 %v1383
        %v1389 = vunpack.c.l.bf16 %v1384
        %v1390 = vunpack.c.h.bf16 %v1384
        %v1391 = vmul.f32 %v1387, %v721
        %v1392 = vmul.f32 %v1388, %v722
        %v1393 = vmul.f32 %v1387, %v723
        %v1394 = vmul.f32 %v1388, %v724
        %v1395 = vmul.f32 %v1387, %v725
        %v1396 = vmul.f32 %v1388, %v726
        %v1397 = vmul.f32 %v1387, %v727
        %v1398 = vmul.f32 %v1388, %v728
        %v1399 = vmul.f32 %v1387, %v729
        %v1400 = vmul.f32 %v1388, %v730
        %v1401 = vmul.f32 %v1387, %v731
        %v1402 = vmul.f32 %v1388, %v732
        %v1403 = vmul.f32 %v1387, %v733
        %v1404 = vmul.f32 %v1388, %v734
        %v1405 = vmul.f32 %v1387, %v735
        %v1406 = vmul.f32 %v1388, %v736
        %v1407 = vmul.f32 %v1387, %v737
        %v1408 = vmul.f32 %v1388, %v738
        %v1409 = vmul.f32 %v1387, %v739
        %v1410 = vmul.f32 %v1388, %v740
        %v1411 = vmul.f32 %v1387, %v741
        %v1412 = vmul.f32 %v1388, %v742
        %v1413 = vmul.f32 %v1387, %v743
        %v1414 = vmul.f32 %v1388, %v744
        %v1415 = vmul.f32 %v1387, %v745
        %v1416 = vmul.f32 %v1388, %v746
        %v1417 = vmul.f32 %v1387, %v747
        %v1418 = vmul.f32 %v1388, %v748
        %v1419 = vmul.f32 %v1387, %v749
        %v1420 = vmul.f32 %v1388, %v750
        %v1421 = vmul.f32 %v1387, %v751
        %v1422 = vmul.f32 %v1388, %v752
        %v1423 = vmul.f32 %v1389, %v721
        %v1424 = vmul.f32 %v1390, %v722
        %v1425 = vmul.f32 %v1389, %v723
        %v1426 = vmul.f32 %v1390, %v724
        %v1427 = vmul.f32 %v1389, %v725
        %v1428 = vmul.f32 %v1390, %v726
        %v1429 = vmul.f32 %v1389, %v727
        %v1430 = vmul.f32 %v1390, %v728
        %v1431 = vmul.f32 %v1389, %v729
        %v1432 = vmul.f32 %v1390, %v730
        %v1433 = vmul.f32 %v1389, %v731
        %v1434 = vmul.f32 %v1390, %v732
        %v1435 = vmul.f32 %v1389, %v733
        %v1436 = vmul.f32 %v1390, %v734
        %v1437 = vmul.f32 %v1389, %v735
        %v1438 = vmul.f32 %v1390, %v736
        %v1439 = vmul.f32 %v1389, %v737
        %v1440 = vmul.f32 %v1390, %v738
        %v1441 = vmul.f32 %v1389, %v739
        %v1442 = vmul.f32 %v1390, %v740
        %v1443 = vmul.f32 %v1389, %v741
        %v1444 = vmul.f32 %v1390, %v742
        %v1445 = vmul.f32 %v1389, %v743
        %v1446 = vmul.f32 %v1390, %v744
        %v1447 = vmul.f32 %v1389, %v745
        %v1448 = vmul.f32 %v1390, %v746
        %v1449 = vmul.f32 %v1389, %v747
        %v1450 = vmul.f32 %v1390, %v748
        %v1451 = vmul.f32 %v1389, %v749
        %v1452 = vmul.f32 %v1390, %v750
        %v1453 = vmul.f32 %v1389, %v751
        %v1454 = vmul.f32 %v1390, %v752
        %v1455 = vpack.c.bf16 %v1391, %v1391
        %v1456 = vpack.c.bf16 %v1392, %v1392
        %v1457 = vpack.c.bf16 %v1393, %v1393
        %v1458 = vpack.c.bf16 %v1394, %v1394
        %v1459 = vpack.c.bf16 %v1395, %v1395
        %v1460 = vpack.c.bf16 %v1396, %v1396
        %v1461 = vpack.c.bf16 %v1397, %v1397
        %v1462 = vpack.c.bf16 %v1398, %v1398
        %v1463 = vpack.c.bf16 %v1399, %v1399
        %v1464 = vpack.c.bf16 %v1400, %v1400
        %v1465 = vpack.c.bf16 %v1401, %v1401
        %v1466 = vpack.c.bf16 %v1402, %v1402
        %v1467 = vpack.c.bf16 %v1403, %v1403
        %v1468 = vpack.c.bf16 %v1404, %v1404
        %v1469 = vpack.c.bf16 %v1405, %v1405
        %v1470 = vpack.c.bf16 %v1406, %v1406
        %v1471 = vpack.c.bf16 %v1407, %v1407
        %v1472 = vpack.c.bf16 %v1408, %v1408
        %v1473 = vpack.c.bf16 %v1409, %v1409
        %v1474 = vpack.c.bf16 %v1410, %v1410
        %v1475 = vpack.c.bf16 %v1411, %v1411
        %v1476 = vpack.c.bf16 %v1412, %v1412
        %v1477 = vpack.c.bf16 %v1413, %v1413
        %v1478 = vpack.c.bf16 %v1414, %v1414
        %v1479 = vpack.c.bf16 %v1415, %v1415
        %v1480 = vpack.c.bf16 %v1416, %v1416
        %v1481 = vpack.c.bf16 %v1417, %v1417
        %v1482 = vpack.c.bf16 %v1418, %v1418
        %v1483 = vpack.c.bf16 %v1419, %v1419
        %v1484 = vpack.c.bf16 %v1420, %v1420
        %v1485 = vpack.c.bf16 %v1421, %v1421
        %v1486 = vpack.c.bf16 %v1422, %v1422
        %v1487 = vpack.c.bf16 %v1423, %v1423
        %v1488 = vpack.c.bf16 %v1424, %v1424
        %v1489 = vpack.c.bf16 %v1425, %v1425
        %v1490 = vpack.c.bf16 %v1426, %v1426
        %v1491 = vpack.c.bf16 %v1427, %v1427
        %v1492 = vpack.c.bf16 %v1428, %v1428
        %v1493 = vpack.c.bf16 %v1429, %v1429
        %v1494 = vpack.c.bf16 %v1430, %v1430
        %v1495 = vpack.c.bf16 %v1431, %v1431
        %v1496 = vpack.c.bf16 %v1432, %v1432
        %v1497 = vpack.c.bf16 %v1433, %v1433
        %v1498 = vpack.c.bf16 %v1434, %v1434
        %v1499 = vpack.c.bf16 %v1435, %v1435
        %v1500 = vpack.c.bf16 %v1436, %v1436
        %v1501 = vpack.c.bf16 %v1437, %v1437
        %v1502 = vpack.c.bf16 %v1438, %v1438
        %v1503 = vpack.c.bf16 %v1439, %v1439
        %v1504 = vpack.c.bf16 %v1440, %v1440
        %v1505 = vpack.c.bf16 %v1441, %v1441
        %v1506 = vpack.c.bf16 %v1442, %v1442
        %v1507 = vpack.c.bf16 %v1443, %v1443
        %v1508 = vpack.c.bf16 %v1444, %v1444
        %v1509 = vpack.c.bf16 %v1445, %v1445
        %v1510 = vpack.c.bf16 %v1446, %v1446
        %v1511 = vpack.c.bf16 %v1447, %v1447
        %v1512 = vpack.c.bf16 %v1448, %v1448
        %v1513 = vpack.c.bf16 %v1449, %v1449
        %v1514 = vpack.c.bf16 %v1450, %v1450
        %v1515 = vpack.c.bf16 %v1451, %v1451
        %v1516 = vpack.c.bf16 %v1452, %v1452
        %v1517 = vpack.c.bf16 %v1453, %v1453
        %v1518 = vpack.c.bf16 %v1454, %v1454
        %v1551 = vunpack.c.l.b16 %v1455
        %v1552 = vunpack.c.l.b16 %v1456
        %v1553 = vunpack.c.l.b16 %v1457
        %v1554 = vunpack.c.l.b16 %v1458
        %v1555 = vunpack.c.l.b16 %v1459
        %v1556 = vunpack.c.l.b16 %v1460
        %v1557 = vunpack.c.l.b16 %v1461
        %v1558 = vunpack.c.l.b16 %v1462
        %v1559 = vunpack.c.l.b16 %v1463
        %v1560 = vunpack.c.l.b16 %v1464
        %v1561 = vunpack.c.l.b16 %v1465
        %v1562 = vunpack.c.l.b16 %v1466
        %v1563 = vunpack.c.l.b16 %v1467
        %v1564 = vunpack.c.l.b16 %v1468
        %v1565 = vunpack.c.l.b16 %v1469
        %v1566 = vunpack.c.l.b16 %v1470
        %v1567 = vunpack.c.l.b16 %v1471
        %v1568 = vunpack.c.l.b16 %v1472
        %v1569 = vunpack.c.l.b16 %v1473
        %v1570 = vunpack.c.l.b16 %v1474
        %v1571 = vunpack.c.l.b16 %v1475
        %v1572 = vunpack.c.l.b16 %v1476
        %v1573 = vunpack.c.l.b16 %v1477
        %v1574 = vunpack.c.l.b16 %v1478
        %v1575 = vunpack.c.l.b16 %v1479
        %v1576 = vunpack.c.l.b16 %v1480
        %v1577 = vunpack.c.l.b16 %v1481
        %v1578 = vunpack.c.l.b16 %v1482
        %v1579 = vunpack.c.l.b16 %v1483
        %v1580 = vunpack.c.l.b16 %v1484
        %v1581 = vunpack.c.l.b16 %v1485
        %v1582 = vunpack.c.l.b16 %v1486
        %v1583 = vpack.c.b16 %v1552, %v1551
        %v1584 = vpack.c.b16 %v1554, %v1553
        %v1585 = vpack.c.b16 %v1556, %v1555
        %v1586 = vpack.c.b16 %v1558, %v1557
        %v1587 = vpack.c.b16 %v1560, %v1559
        %v1588 = vpack.c.b16 %v1562, %v1561
        %v1589 = vpack.c.b16 %v1564, %v1563
        %v1590 = vpack.c.b16 %v1566, %v1565
        %v1591 = vpack.c.b16 %v1568, %v1567
        %v1592 = vpack.c.b16 %v1570, %v1569
        %v1593 = vpack.c.b16 %v1572, %v1571
        %v1594 = vpack.c.b16 %v1574, %v1573
        %v1595 = vpack.c.b16 %v1576, %v1575
        %v1596 = vpack.c.b16 %v1578, %v1577
        %v1597 = vpack.c.b16 %v1580, %v1579
        %v1598 = vpack.c.b16 %v1582, %v1581
        %1615 = vmatpush.bf16.msra.mxu0 %v1590
        %1616 = vmatpush.bf16.msra.mxu0 %v1589
        %1617 = vmatpush.bf16.msra.mxu0 %v1588
        %1618 = vmatpush.bf16.msra.mxu0 %v1587
        %1619 = vmatpush.bf16.msra.mxu0 %v1586
        %1620 = vmatpush.bf16.msra.mxu0 %v1585
        %1621 = vmatpush.bf16.msra.mxu0 %v1584
        %1622 = vmatpush.bf16.msra.mxu0 %v1583
        %1623 = vmatmul.bf16.gmra.mxu0 %v1229
        %v1624 = vpop.f32.mrf.mxu0
        %v1625 = vadd.f32 0.0, %v1624
        %v1626 = vpop.f32.mrf.mxu0
        %v1627 = vadd.f32 0.0, %v1626
        %1628 = vdwg.mxu0
        %1629 = vmatpush.bf16.msra.mxu0 %v1598
        %1630 = vmatpush.bf16.msra.mxu0 %v1597
        %1631 = vmatpush.bf16.msra.mxu0 %v1596
        %1632 = vmatpush.bf16.msra.mxu0 %v1595
        %1633 = vmatpush.bf16.msra.mxu0 %v1594
        %1634 = vmatpush.bf16.msra.mxu0 %v1593
        %1635 = vmatpush.bf16.msra.mxu0 %v1592
        %1636 = vmatpush.bf16.msra.mxu0 %v1591
        %1637 = vmatmul.bf16.gmra.mxu0 %v1230
        %v1638 = vpop.f32.mrf.mxu0
        %v1639 = vadd.f32 %v1625, %v1638
        %v1640 = vpop.f32.mrf.mxu0
        %v1641 = vadd.f32 %v1627, %v1640
        %1642 = vdwg.mxu0
        %v1675 = vunpack.c.l.b16 %v1487
        %v1676 = vunpack.c.l.b16 %v1488
        %v1677 = vunpack.c.l.b16 %v1489
        %v1678 = vunpack.c.l.b16 %v1490
        %v1679 = vunpack.c.l.b16 %v1491
        %v1680 = vunpack.c.l.b16 %v1492
        %v1681 = vunpack.c.l.b16 %v1493
        %v1682 = vunpack.c.l.b16 %v1494
        %v1683 = vunpack.c.l.b16 %v1495
        %v1684 = vunpack.c.l.b16 %v1496
        %v1685 = vunpack.c.l.b16 %v1497
        %v1686 = vunpack.c.l.b16 %v1498
        %v1687 = vunpack.c.l.b16 %v1499
        %v1688 = vunpack.c.l.b16 %v1500
        %v1689 = vunpack.c.l.b16 %v1501
        %v1690 = vunpack.c.l.b16 %v1502
        %v1691 = vunpack.c.l.b16 %v1503
        %v1692 = vunpack.c.l.b16 %v1504
        %v1693 = vunpack.c.l.b16 %v1505
        %v1694 = vunpack.c.l.b16 %v1506
        %v1695 = vunpack.c.l.b16 %v1507
        %v1696 = vunpack.c.l.b16 %v1508
        %v1697 = vunpack.c.l.b16 %v1509
        %v1698 = vunpack.c.l.b16 %v1510
        %v1699 = vunpack.c.l.b16 %v1511
        %v1700 = vunpack.c.l.b16 %v1512
        %v1701 = vunpack.c.l.b16 %v1513
        %v1702 = vunpack.c.l.b16 %v1514
        %v1703 = vunpack.c.l.b16 %v1515
        %v1704 = vunpack.c.l.b16 %v1516
        %v1705 = vunpack.c.l.b16 %v1517
        %v1706 = vunpack.c.l.b16 %v1518
        %v1707 = vpack.c.b16 %v1676, %v1675
        %v1708 = vpack.c.b16 %v1678, %v1677
        %v1709 = vpack.c.b16 %v1680, %v1679
        %v1710 = vpack.c.b16 %v1682, %v1681
        %v1711 = vpack.c.b16 %v1684, %v1683
        %v1712 = vpack.c.b16 %v1686, %v1685
        %v1713 = vpack.c.b16 %v1688, %v1687
        %v1714 = vpack.c.b16 %v1690, %v1689
        %v1715 = vpack.c.b16 %v1692, %v1691
        %v1716 = vpack.c.b16 %v1694, %v1693
        %v1717 = vpack.c.b16 %v1696, %v1695
        %v1718 = vpack.c.b16 %v1698, %v1697
        %v1719 = vpack.c.b16 %v1700, %v1699
        %v1720 = vpack.c.b16 %v1702, %v1701
        %v1721 = vpack.c.b16 %v1704, %v1703
        %v1722 = vpack.c.b16 %v1706, %v1705
        %1739 = vmatpush.bf16.msra.mxu0 %v1714
        %1740 = vmatpush.bf16.msra.mxu0 %v1713
        %1741 = vmatpush.bf16.msra.mxu0 %v1712
        %1742 = vmatpush.bf16.msra.mxu0 %v1711
        %1743 = vmatpush.bf16.msra.mxu0 %v1710
        %1744 = vmatpush.bf16.msra.mxu0 %v1709
        %1745 = vmatpush.bf16.msra.mxu0 %v1708
        %1746 = vmatpush.bf16.msra.mxu0 %v1707
        %1747 = vmatmul.bf16.gmra.mxu0 %v1231
        %v1748 = vpop.f32.mrf.mxu0
        %v1749 = vadd.f32 0.0, %v1748
        %v1750 = vpop.f32.mrf.mxu0
        %v1751 = vadd.f32 0.0, %v1750
        %1752 = vdwg.mxu0
        %1753 = vmatpush.bf16.msra.mxu0 %v1722
        %1754 = vmatpush.bf16.msra.mxu0 %v1721
        %1755 = vmatpush.bf16.msra.mxu0 %v1720
        %1756 = vmatpush.bf16.msra.mxu0 %v1719
        %1757 = vmatpush.bf16.msra.mxu0 %v1718
        %1758 = vmatpush.bf16.msra.mxu0 %v1717
        %1759 = vmatpush.bf16.msra.mxu0 %v1716
        %1760 = vmatpush.bf16.msra.mxu0 %v1715
        %1761 = vmatmul.bf16.gmra.mxu0 %v1232
        %v1762 = vpop.f32.mrf.mxu0
        %v1763 = vadd.f32 %v1749, %v1762
        %v1764 = vpop.f32.mrf.mxu0
        %v1765 = vadd.f32 %v1751, %v1764
        %1766 = vdwg.mxu0
        %v1767 = vld [vmem:[%s6] sm:$0xff]
        %v1768 = vld [vmem:[%s6 + $0x8] sm:$0xff]
        %vm1769 = vcmask 130048
        %v1771 = vsel %vm1769, %v1371, 0
        %v1774 = vsel %vm1769, %v1372, 0
        %v1777 = vsel %vm1769, %v1373, 0
        %v1780 = vsel %vm1769, %v1374, 0
        %1782 = vmatpush.msra.mxu0 0.0
        %1783 = vmatpush.msra.mxu0 0.0
        %1784 = vmatpush.msra.mxu0 0.0
        %1785 = vmatpush.msra.mxu0 0.0
        %1786 = vmatpush.msra.mxu0 0.0
        %1787 = vmatpush.msra.mxu0 0.0
        %1788 = vmatpush.msra.mxu0 0.0
        %1789 = vmatpush.msra.mxu0 0.0
        %1790 = vmatpush.msra.mxu0 0.0
        %1791 = vmatpush.msra.mxu0 0.0
        %1792 = vmatpush.msra.mxu0 0.0
        %1793 = vmatpush.msra.mxu0 0.0
        %1794 = vmatpush.msra.mxu0 0.0
        %1795 = vmatpush.msra.mxu0 0.0
        %1796 = vmatpush.msra.mxu0 %v1768
        %1797 = vmatpush.msra.mxu0 %v1767
        %1798 = vmatmul.f32.gmra.mxu0 %v1771
        %v1799 = vpop.f32.mrf.mxu0
        %v1800 = vadd.f32 0.0, %v1799
        %1801 = vmatmul.f32.gmra.mxu0 %v1774
        %v1802 = vpop.f32.mrf.mxu0
        %v1803 = vadd.f32 0.0, %v1802
        %1804 = vmatmul.f32.gmra.mxu0 %v1777
        %v1805 = vpop.f32.mrf.mxu0
        %v1806 = vadd.f32 0.0, %v1805
        %1807 = vmatmul.f32.gmra.mxu0 %v1780
        %v1808 = vpop.f32.mrf.mxu0
        %v1809 = vadd.f32 0.0, %v1808
        %1810 = vdwg.mxu0
        %v1811 = vmul.f32 %v1639, %v1800
        %v1812 = vmul.f32 %v1641, %v1803
        %v1813 = vmul.f32 %v1763, %v1806
        %v1814 = vmul.f32 %v1765, %v1809
        %v1815 = vpack.c.bf16 %v1812, %v1811
        %v1816 = vpack.c.bf16 %v1814, %v1813
        %v1817 = vld [vmem:[#allocation10] sm:$0xf]
        %v1818 = vld [vmem:[#allocation10 + $0x4] sm:$0xf]
        %v1819 = vld [vmem:[#allocation10 + $0x8] sm:$0xf]
        %v1820 = vld [vmem:[#allocation10 + $0xc] sm:$0xf]
        %v1821 = vld [vmem:[#allocation10 + $0x10] sm:$0xf]
        %v1822 = vld [vmem:[#allocation10 + $0x14] sm:$0xf]
        %v1823 = vld [vmem:[#allocation10 + $0x18] sm:$0xf]
        %v1824 = vld [vmem:[#allocation10 + $0x1c] sm:$0xf]
        %v1825 = vld [vmem:[#allocation10 + $0x20] sm:$0xf]
        %v1826 = vld [vmem:[#allocation10 + $0x24] sm:$0xf]
        %v1827 = vld [vmem:[#allocation10 + $0x28] sm:$0xf]
        %v1828 = vld [vmem:[#allocation10 + $0x2c] sm:$0xf]
        %v1829 = vld [vmem:[#allocation10 + $0x30] sm:$0xf]
        %v1830 = vld [vmem:[#allocation10 + $0x34] sm:$0xf]
        %v1831 = vld [vmem:[#allocation10 + $0x38] sm:$0xf]
        %v1832 = vld [vmem:[#allocation10 + $0x3c] sm:$0xf]
        %v1833 = vld [vmem:[%s8] sm:$0x1]
        %v1835 = vperm.slane %v1833, 0
        %v1853 = vunpack.c.l.b16 %v1817
        %v1854 = vunpack.c.l.b16 %v1818
        %v1855 = vunpack.c.l.b16 %v1819
        %v1856 = vunpack.c.l.b16 %v1820
        %v1857 = vunpack.c.l.b16 %v1821
        %v1858 = vunpack.c.l.b16 %v1822
        %v1859 = vunpack.c.l.b16 %v1823
        %v1860 = vunpack.c.l.b16 %v1824
        %v1861 = vunpack.c.l.b16 %v1825
        %v1862 = vunpack.c.l.b16 %v1826
        %v1863 = vunpack.c.l.b16 %v1827
        %v1864 = vunpack.c.l.b16 %v1828
        %v1865 = vunpack.c.l.b16 %v1829
        %v1866 = vunpack.c.l.b16 %v1830
        %v1867 = vunpack.c.l.b16 %v1831
        %v1868 = vunpack.c.l.b16 %v1832
        %v1869 = vpack.c.b16 %v1854, %v1853
        %v1870 = vpack.c.b16 %v1856, %v1855
        %v1871 = vpack.c.b16 %v1858, %v1857
        %v1872 = vpack.c.b16 %v1860, %v1859
        %v1873 = vpack.c.b16 %v1862, %v1861
        %v1874 = vpack.c.b16 %v1864, %v1863
        %v1875 = vpack.c.b16 %v1866, %v1865
        %v1876 = vpack.c.b16 %v1868, %v1867
        %1885 = vmatpush.bf16.msra.mxu0 %v1876
        %1886 = vmatpush.bf16.msra.mxu0 %v1875
        %1887 = vmatpush.bf16.msra.mxu0 %v1874
        %1888 = vmatpush.bf16.msra.mxu0 %v1873
        %1889 = vmatpush.bf16.msra.mxu0 %v1872
        %1890 = vmatpush.bf16.msra.mxu0 %v1871
        %1891 = vmatpush.bf16.msra.mxu0 %v1870
        %1892 = vmatpush.bf16.msra.mxu0 %v1869
        %1893 = vmatmul.bf16.gmra.mxu0 %v1815
        %v1894 = vpop.f32.mrf.mxu0
        %v1895 = vadd.f32 %v1835, %v1894
        %v1896 = vpop.f32.mrf.mxu0
        %v1897 = vadd.f32 %v1835, %v1896
        %1898 = vmatmul.bf16.gmra.mxu0 %v1816
        %v1899 = vpop.f32.mrf.mxu0
        %v1900 = vadd.f32 %v1835, %v1899
        %v1901 = vpop.f32.mrf.mxu0
        %v1902 = vadd.f32 %v1835, %v1901
        %1903 = vdwg.mxu0
        %1904 = vst [vmem:[%s417] sm:$0xff] %v1895
        %1905 = vst [vmem:[%s417 + $0x8] sm:$0xff] %v1897
        %1906 = vst [vmem:[%s417 + $0x10] sm:$0xff] %v1900
        %1907 = vst [vmem:[%s417 + $0x18] sm:$0xff] %v1902
        %s1908 = sand.u32 %s230, 1
        %s1909 = scalar_lea.sflag [#allocation4], %s1908
        %s1910 = sand.u32 %s230, 1
        %s1911 = smul.addr %s1910, 32
        %s1912 = scalar_lea.vmem [#allocation11], %s1911
        // Predicated region
        $region77: #{tpu_custom_call.1} parent=55 // pred_check
          %p1913 = pneg %p240
        $region78: #{tpu_custom_call.1} parent=55 // pred_check_branch
          %1915 = sbr.rel (%p1913) target = $region80
        $region79: #{tpu_custom_call.1} parent=55 // pred_region
          %s1916 = smul.u32 2, %s28
          %1918 = vsyncadd %s1909, 0
          %s1919 = smul.addr %s1916, 2
          %s1920 = smul.addr %s1919, 8
          %s1921 = scalar_lea.hbm %s9, %s1920
          %s1922 = sshll.u32 %s1912, 4
          %s1923 = int_to_ptr.vmem [resolvable:$true] %s1922
          %s1924 = sshll.u32 %s1921, 4
          %s1925 = int_to_ptr.hbm [resolvable:$true] %s1924
          %1930 = dma.vmem_to_hbm [thread:$0]  %s1923, 512, %s1925, %s1909, 128, 128, 8
        $region80: #{tpu_custom_call.1} parent=55 // pred_fallthru
          _
      $region56: #{tpu_custom_call.1} parent=5 // pred_fallthru
        _
      %p1931 = scmp.le.s32.totalorder 2, %s23
      // Predicated region
      $region81: #{tpu_custom_call.1} parent=5 // pred_check
        %p1932 = pneg %p1931
      $region82: #{tpu_custom_call.1} parent=5 // pred_check_branch
        %1934 = sbr.rel (%p1932) target = $region84
      $region83: #{tpu_custom_call.1} parent=5 // pred_region
        %s1935 = ssub.s32 %s23, 2
        // Predicated region
        $region85: #{tpu_custom_call.1} parent=83 // pred_check
          %p1936 = pneg %p246
        $region86: #{tpu_custom_call.1} parent=83 // pred_check_branch
          %1938 = sbr.rel (%p1936) target = $region88
        $region87: #{tpu_custom_call.1} parent=83 // pred_region
          %s1939 = sand.u32 %s231, 1
          %s1940 = scalar_lea.sflag [#allocation4], %s1939
          %s1941 = sand.u32 %s231, 1
          %s1942 = smul.addr %s1941, 32
          %s1943 = scalar_lea.vmem [#allocation11], %s1942
          %1945 = dma.done %s1940, 512
        $region88: #{tpu_custom_call.1} parent=83 // pred_fallthru
          _
      $region84: #{tpu_custom_call.1} parent=5 // pred_fallthru
        _
    $region6: #{tpu_custom_call.1} parent=1 // loop_footer
      %s27 = sadd.s32 1, %s23
    $region7: #{tpu_custom_call.1} parent=1 // loop_footer_branch
      %22 = sbr.rel target = $region3
    $region8: #{tpu_custom_call.1} parent=1 // loop_exit
      _
    %1946 = vsyncpa [#allocation3], 1
    %s1947 = scalar_lea.sflag [#allocation3], 1
    %1948 = vsyncpa %s1947, 1
    %1949 = vsyncpa [#allocation6], 1
    %1950 = vsyncpa [#allocation9], 1
    %1951 = vsyncpa [#allocation4], 1
    %s1952 = scalar_lea.sflag [#allocation4], 1
    %1953 = vsyncpa %s1952, 1

</llo_original>
